<compile_context>
chip_gen: v7x
topology: tpu7x:2x2x1
jax: 0.10.0
libtpu: 0.0.40
codegen_flags: <defaults>
</compile_context>

<pallas_src>
import functools

import jax
import jax.numpy as jnp
from jax.experimental import pallas as pl
from jax.experimental.pallas import tpu as pltpu

INPUT_DIM = 4
LATENT_DIM = 12
OUT_LANES = 128                       # packed, lane-dense output slab width
MU_OFF = 0
LV_OFF = LATENT_DIM
RC_OFF = 2 * LATENT_DIM               # recon starts at lane 24


def vae_kernel(x_ref, eps_ref,
               w1, b1, w2, b2, w3, b3,
               w4, b4,                    # fused+padded head: [128, 128] f32, mu|logvar at lanes 0..23
               w5, b5, w6, b6, w7, b7,
               w8, b8,                    # padded fc8: [512, 128] bf16, recon at lanes 24..27
               out_ref):
    x = x_ref[...]                                            # [TB, 4] f32

    # ---- encoder: fc1..fc3 on the MXU (bf16 operands, f32 accumulate) ----
    h = jnp.maximum(jnp.dot(x.astype(jnp.bfloat16), w1[...],
                            preferred_element_type=jnp.float32) + b1[...], 0.0)
    h = jnp.maximum(jnp.dot(h.astype(jnp.bfloat16), w2[...],
                            preferred_element_type=jnp.float32) + b2[...], 0.0)
    h = jnp.maximum(jnp.dot(h.astype(jnp.bfloat16), w3[...],
                            preferred_element_type=jnp.float32) + b3[...], 0.0)

    # ---- fused mean/logvar head (kept f32: logvar feeds exp) ----
    # Weight is zero-padded to the full output slab, so this matmul already places
    # mu at lanes [0,12) and logvar at lanes [12,24); lanes 24..127 are exactly 0.
    ml_full = jnp.dot(h, w4[...], preferred_element_type=jnp.float32) + b4[...]   # [TB, 128]
    mu = ml_full[:, MU_OFF:MU_OFF + LATENT_DIM]
    logvar = ml_full[:, LV_OFF:LV_OFF + LATENT_DIM]

    # ---- reparameterize: z = mu + eps * exp(0.5 * logvar) (all f32, EUP exp) ----
    z = mu + eps_ref[...] * jnp.exp(0.5 * logvar)             # [TB, 12]

    # ---- decoder: fc5..fc7 on the MXU ----
    h = jnp.maximum(jnp.dot(z.astype(jnp.bfloat16), w5[...],
                            preferred_element_type=jnp.float32) + b5[...], 0.0)
    h = jnp.maximum(jnp.dot(h.astype(jnp.bfloat16), w6[...],
                            preferred_element_type=jnp.float32) + b6[...], 0.0)
    h = jnp.maximum(jnp.dot(h.astype(jnp.bfloat16), w7[...],
                            preferred_element_type=jnp.float32) + b7[...], 0.0)

    # ---- fc8, also pre-placed into the slab (recon at lanes [24,28), rest 0) ----
    recon_full = jnp.dot(h.astype(jnp.bfloat16), w8[...],
                         preferred_element_type=jnp.float32) + b8[...]            # [TB, 128]

    # single unmasked, lane-dense store: [mu | logvar | recon | 0-pad]
    out_ref[...] = ml_full + recon_full


def init_params(key, input_dim=INPUT_DIM, latent_dim=LATENT_DIM):
    """PyTorch-style Linear init: U(-1/sqrt(fan_in), +1/sqrt(fan_in)).
    Weights stored as [in, out] (pre-transposed for the kernel)."""
    dims = [
        (input_dim, 512), (512, 256), (256, 128),             # fc1..fc3
        (128, latent_dim), (128, latent_dim),                  # fc4_mean, fc4_logvar
        (latent_dim, 128), (128, 256), (256, 512),             # fc5..fc7
        (512, input_dim),                                      # fc8
    ]
    params = []
    for (fan_in, fan_out) in dims:
        key, kw, kb = jax.random.split(key, 3)
        bound = 1.0 / jnp.sqrt(jnp.float32(fan_in))
        w = jax.random.uniform(kw, (fan_in, fan_out), jnp.float32, -bound, bound)
        b = jax.random.uniform(kb, (1, fan_out), jnp.float32, -bound, bound)
        params.append((w, b))
    return params


def _round_up(x, m):
    return ((x + m - 1) // m) * m


@functools.partial(jax.jit, static_argnames=("tile_b",))
def vae_forward(x, eps, params, tile_b=512):
    B = x.shape[0]

    # --- batch-tile selection -------------------------------------------------
    # Blocks need an 8-row multiple (sublanes) unless they span the whole batch.
    # When B is big enough, guarantee >= 2 grid steps so the "parallel" axis can
    # shard across v7x's two TensorCores.
    if B <= 8:
        tb = B
    else:
        half = _round_up(pl.cdiv(B, 2), 8)
        tb = min(tile_b, half)
    Bp = _round_up(B, tb)

    if Bp != B:
        # TODO(synk): handle the ragged tail with pl.when on row count inside the
        # last grid step instead of materializing padded copies of x/eps.
        pad = Bp - B
        x = jnp.pad(x, ((0, pad), (0, 0)))
        eps = jnp.pad(eps, ((0, pad), (0, 0)))

    (w1, b1), (w2, b2), (w3, b3), (w4m, b4m), (w4v, b4v), \
        (w5, b5), (w6, b6), (w7, b7), (w8, b8) = params

    bf16 = jnp.bfloat16
    L = LATENT_DIM

    # Fused + lane-placed head: columns [0,12)=mean, [12,24)=logvar, rest zero.
    # Kept in f32 (precision-sensitive: logvar feeds exp()).
    w4 = jnp.zeros((128, OUT_LANES), jnp.float32)
    w4 = w4.at[:, MU_OFF:MU_OFF + L].set(w4m).at[:, LV_OFF:LV_OFF + L].set(w4v)
    b4 = jnp.zeros((1, OUT_LANES), jnp.float32)
    b4 = b4.at[:, MU_OFF:MU_OFF + L].set(b4m[0]).at[:, LV_OFF:LV_OFF + L].set(b4v[0])

    # Lane-placed fc8: columns [24,28) = recon, rest zero.
    w8p = jnp.zeros((512, OUT_LANES), bf16).at[:, RC_OFF:RC_OFF + INPUT_DIM].set(
        w8.astype(bf16))
    b8p = jnp.zeros((1, OUT_LANES), jnp.float32).at[:, RC_OFF:RC_OFF + INPUT_DIM].set(
        b8[0])

    # Large weights in bf16 (MXU-native operand dtype); biases stay f32.
    flat = [w1.astype(bf16), b1, w2.astype(bf16), b2, w3.astype(bf16), b3,
            w4, b4,
            w5.astype(bf16), b5, w6.astype(bf16), b6, w7.astype(bf16), b7,
            w8p, b8p]

    grid = (Bp // tb,)

    # Batch-tiled activations / outputs; weights & biases stay VMEM-resident across
    # grid steps (constant index_map -> no re-DMA).
    x_spec = pl.BlockSpec((tb, INPUT_DIM), lambda i: (i, 0))
    eps_spec = pl.BlockSpec((tb, LATENT_DIM), lambda i: (i, 0))
    param_specs = [pl.BlockSpec(p.shape, lambda i: (0, 0)) for p in flat]
    out_spec = pl.BlockSpec((tb, OUT_LANES), lambda i: (i, 0))

    flops = 2 * Bp * (INPUT_DIM * 512 + 512 * 256 + 256 * 128
                      + 128 * OUT_LANES + LATENT_DIM * 128
                      + 128 * 256 + 256 * 512 + 512 * OUT_LANES)
    bytes_accessed = (sum(int(p.size) * p.dtype.itemsize for p in flat)
                      + Bp * (INPUT_DIM + LATENT_DIM + OUT_LANES) * 4)
    cost = pl.CostEstimate(flops=flops,
                           transcendentals=Bp * LATENT_DIM,
                           bytes_accessed=bytes_accessed)

    cp_kwargs = dict(dimension_semantics=("parallel",))
    if tb > 512:
        # v5e's default scoped-VMEM limit is 16 MiB; large f32 intermediates at big
        # tiles need more headroom (32 MiB is already the v6e/v7x default).
        cp_kwargs["vmem_limit_bytes"] = 32 * 1024 * 1024

    packed = pl.pallas_call(
        vae_kernel,
        out_shape=jax.ShapeDtypeStruct((Bp, OUT_LANES), jnp.float32),
        grid=grid,
        in_specs=[x_spec, eps_spec] + param_specs,
        out_specs=out_spec,
        compiler_params=pltpu.CompilerParams(**cp_kwargs),
        cost_estimate=cost,
    )(x, eps, *flat)

    packed = packed[:B]
    mu = packed[:, MU_OFF:MU_OFF + LATENT_DIM]
    logvar = packed[:, LV_OFF:LV_OFF + LATENT_DIM]
    recon = packed[:, RC_OFF:RC_OFF + INPUT_DIM]
    return recon, mu, logvar


def vae_reference(x, eps, params):
    """Pure-JAX reference matching the PyTorch forward (for correctness check)."""
    (w1, b1), (w2, b2), (w3, b3), (w4m, b4m), (w4v, b4v), \
        (w5, b5), (w6, b6), (w7, b7), (w8, b8) = params
    h = jax.nn.relu(x @ w1 + b1)
    h = jax.nn.relu(h @ w2 + b2)
    h = jax.nn.relu(h @ w3 + b3)
    mu = h @ w4m + b4m
    logvar = h @ w4v + b4v
    z = mu + eps * jnp.exp(0.5 * logvar)
    h = jax.nn.relu(z @ w5 + b5)
    h = jax.nn.relu(h @ w6 + b6)
    h = jax.nn.relu(h @ w7 + b7)
    recon = h @ w8 + b8
    return recon, mu, logvar


if __name__ == "__main__":
    key = jax.random.PRNGKey(0)
    kx, keps, kparams = jax.random.split(key, 3)

    B = 8
    x = jax.random.normal(kx, (B, INPUT_DIM), jnp.float32)
    # eps plays the role of torch.randn_like(std) in reparameterize; generated
    # deterministically here and consumed inside the kernel.
    eps = jax.random.normal(keps, (B, LATENT_DIM), jnp.float32)

    params = init_params(kparams)

    recon, mu, logvar = vae_forward(x, eps, params)
    jax.block_until_ready((recon, mu, logvar))

    # shape / dtype contract
    assert recon.shape == (B, INPUT_DIM) and recon.dtype == jnp.float32
    assert mu.shape == (B, LATENT_DIM) and mu.dtype == jnp.float32
    assert logvar.shape == (B, LATENT_DIM) and logvar.dtype == jnp.float32

    # numerical sanity vs pure-JAX f32 reference (bf16 MXU operands -> loose tol)
    r_ref, m_ref, lv_ref = vae_reference(x, eps, params)
    assert jnp.allclose(recon, r_ref, rtol=5e-2, atol=5e-2)
    assert jnp.allclose(mu, m_ref, rtol=5e-2, atol=5e-2)
    assert jnp.allclose(logvar, lv_ref, rtol=5e-2, atol=5e-2)

    print("KERNEL_OK")
</pallas_src>

<mosaic_0001>
module attributes {stable_mosaic.version = 11 : i64} {
  func.func @vae_kernel(%arg0: i32, %arg1: memref<8x4xf32, #tpu.memory_space<vmem>>, %arg2: memref<8x12xf32, #tpu.memory_space<vmem>>, %arg3: memref<4x512xbf16, #tpu.memory_space<vmem>>, %arg4: memref<1x512xf32, #tpu.memory_space<vmem>>, %arg5: memref<512x256xbf16, #tpu.memory_space<vmem>>, %arg6: memref<1x256xf32, #tpu.memory_space<vmem>>, %arg7: memref<256x128xbf16, #tpu.memory_space<vmem>>, %arg8: memref<1x128xf32, #tpu.memory_space<vmem>>, %arg9: memref<128x128xf32, #tpu.memory_space<vmem>>, %arg10: memref<1x128xf32, #tpu.memory_space<vmem>>, %arg11: memref<12x128xbf16, #tpu.memory_space<vmem>>, %arg12: memref<1x128xf32, #tpu.memory_space<vmem>>, %arg13: memref<128x256xbf16, #tpu.memory_space<vmem>>, %arg14: memref<1x256xf32, #tpu.memory_space<vmem>>, %arg15: memref<256x512xbf16, #tpu.memory_space<vmem>>, %arg16: memref<1x512xf32, #tpu.memory_space<vmem>>, %arg17: memref<512x128xbf16, #tpu.memory_space<vmem>>, %arg18: memref<1x128xf32, #tpu.memory_space<vmem>>, %arg19: memref<8x128xf32, #tpu.memory_space<vmem>>) attributes {dimension_semantics = [#tpu.dimension_semantics<parallel>], iteration_bounds = array<i64: 1>, scalar_prefetch = 0 : i64, scratch_operands = 0 : i64, tpu.core_type = #tpu.core_type<tc>, window_params = [{transform_indices = @transform_0, window_bounds = array<i64: 8, 4>}, {transform_indices = @transform_1, window_bounds = array<i64: 8, 12>}, {pipeline_mode = #tpu.pipeline_mode<synchronous>, transform_indices = @transform_2, window_bounds = array<i64: 4, 512>}, {pipeline_mode = #tpu.pipeline_mode<synchronous>, transform_indices = @transform_3, window_bounds = array<i64: 1, 512>}, {pipeline_mode = #tpu.pipeline_mode<synchronous>, transform_indices = @transform_4, window_bounds = array<i64: 512, 256>}, {pipeline_mode = #tpu.pipeline_mode<synchronous>, transform_indices = @transform_5, window_bounds = array<i64: 1, 256>}, {pipeline_mode = #tpu.pipeline_mode<synchronous>, transform_indices = @transform_6, window_bounds = array<i64: 256, 128>}, {pipeline_mode = #tpu.pipeline_mode<synchronous>, transform_indices = @transform_7, window_bounds = array<i64: 1, 128>}, {pipeline_mode = #tpu.pipeline_mode<synchronous>, transform_indices = @transform_8, window_bounds = array<i64: 128, 128>}, {pipeline_mode = #tpu.pipeline_mode<synchronous>, transform_indices = @transform_9, window_bounds = array<i64: 1, 128>}, {pipeline_mode = #tpu.pipeline_mode<synchronous>, transform_indices = @transform_10, window_bounds = array<i64: 12, 128>}, {pipeline_mode = #tpu.pipeline_mode<synchronous>, transform_indices = @transform_11, window_bounds = array<i64: 1, 128>}, {pipeline_mode = #tpu.pipeline_mode<synchronous>, transform_indices = @transform_12, window_bounds = array<i64: 128, 256>}, {pipeline_mode = #tpu.pipeline_mode<synchronous>, transform_indices = @transform_13, window_bounds = array<i64: 1, 256>}, {pipeline_mode = #tpu.pipeline_mode<synchronous>, transform_indices = @transform_14, window_bounds = array<i64: 256, 512>}, {pipeline_mode = #tpu.pipeline_mode<synchronous>, transform_indices = @transform_15, window_bounds = array<i64: 1, 512>}, {pipeline_mode = #tpu.pipeline_mode<synchronous>, transform_indices = @transform_16, window_bounds = array<i64: 512, 128>}, {pipeline_mode = #tpu.pipeline_mode<synchronous>, transform_indices = @transform_17, window_bounds = array<i64: 1, 128>}, {transform_indices = @transform_18, window_bounds = array<i64: 8, 128>}]} {
    %c0 = arith.constant 0 : index
    %c0_0 = arith.constant 0 : index
    %0 = vector.load %arg1[%c0, %c0_0] : memref<8x4xf32, #tpu.memory_space<vmem>>, vector<8x4xf32>
    %1 = arith.truncf %0 : vector<8x4xf32> to vector<8x4xbf16>
    %c0_1 = arith.constant 0 : index
    %c0_2 = arith.constant 0 : index
    %2 = vector.load %arg3[%c0_1, %c0_2] : memref<4x512xbf16, #tpu.memory_space<vmem>>, vector<4x512xbf16>
    %cst = arith.constant dense<0.000000e+00> : vector<8x512xf32>
    %3 = tpu.matmul %1, %2, %cst {dimension_numbers = #tpu.dot_dimension_numbers<[1], [0], [0], [1], [0, 0, 1, 1], [], []>} : vector<8x4xbf16>, vector<4x512xbf16>, vector<8x512xf32> -> vector<8x512xf32>
    %c0_3 = arith.constant 0 : index
    %c0_4 = arith.constant 0 : index
    %4 = vector.load %arg4[%c0_3, %c0_4] : memref<1x512xf32, #tpu.memory_space<vmem>>, vector<1x512xf32>
    %5 = vector.broadcast %4 : vector<1x512xf32> to vector<8x512xf32>
    %6 = arith.addf %3, %5 : vector<8x512xf32>
    %cst_5 = arith.constant 0.000000e+00 : f32
    %7 = vector.broadcast %cst_5 : f32 to vector<8x512xf32>
    %8 = arith.maximumf %6, %7 : vector<8x512xf32>
    %9 = arith.truncf %8 : vector<8x512xf32> to vector<8x512xbf16>
    %c0_6 = arith.constant 0 : index
    %c0_7 = arith.constant 0 : index
    %10 = vector.load %arg5[%c0_6, %c0_7] : memref<512x256xbf16, #tpu.memory_space<vmem>>, vector<512x256xbf16>
    %cst_8 = arith.constant dense<0.000000e+00> : vector<8x256xf32>
    %11 = tpu.matmul %9, %10, %cst_8 {dimension_numbers = #tpu.dot_dimension_numbers<[1], [0], [0], [1], [0, 0, 1, 1], [], []>} : vector<8x512xbf16>, vector<512x256xbf16>, vector<8x256xf32> -> vector<8x256xf32>
    %c0_9 = arith.constant 0 : index
    %c0_10 = arith.constant 0 : index
    %12 = vector.load %arg6[%c0_9, %c0_10] : memref<1x256xf32, #tpu.memory_space<vmem>>, vector<1x256xf32>
    %13 = vector.broadcast %12 : vector<1x256xf32> to vector<8x256xf32>
    %14 = arith.addf %11, %13 : vector<8x256xf32>
    %cst_11 = arith.constant 0.000000e+00 : f32
    %15 = vector.broadcast %cst_11 : f32 to vector<8x256xf32>
    %16 = arith.maximumf %14, %15 : vector<8x256xf32>
    %17 = arith.truncf %16 : vector<8x256xf32> to vector<8x256xbf16>
    %c0_12 = arith.constant 0 : index
    %c0_13 = arith.constant 0 : index
    %18 = vector.load %arg7[%c0_12, %c0_13] : memref<256x128xbf16, #tpu.memory_space<vmem>>, vector<256x128xbf16>
    %cst_14 = arith.constant dense<0.000000e+00> : vector<8x128xf32>
    %19 = tpu.matmul %17, %18, %cst_14 {dimension_numbers = #tpu.dot_dimension_numbers<[1], [0], [0], [1], [0, 0, 1, 1], [], []>} : vector<8x256xbf16>, vector<256x128xbf16>, vector<8x128xf32> -> vector<8x128xf32>
    %c0_15 = arith.constant 0 : index
    %c0_16 = arith.constant 0 : index
    %20 = vector.load %arg8[%c0_15, %c0_16] : memref<1x128xf32, #tpu.memory_space<vmem>>, vector<1x128xf32>
    %21 = vector.broadcast %20 : vector<1x128xf32> to vector<8x128xf32>
    %22 = arith.addf %19, %21 : vector<8x128xf32>
    %cst_17 = arith.constant 0.000000e+00 : f32
    %23 = vector.broadcast %cst_17 : f32 to vector<8x128xf32>
    %24 = arith.maximumf %22, %23 : vector<8x128xf32>
    %c0_18 = arith.constant 0 : index
    %c0_19 = arith.constant 0 : index
    %25 = vector.load %arg9[%c0_18, %c0_19] : memref<128x128xf32, #tpu.memory_space<vmem>>, vector<128x128xf32>
    %cst_20 = arith.constant dense<0.000000e+00> : vector<8x128xf32>
    %26 = tpu.matmul %24, %25, %cst_20 {dimension_numbers = #tpu.dot_dimension_numbers<[1], [0], [0], [1], [0, 0, 1, 1], [], []>} : vector<8x128xf32>, vector<128x128xf32>, vector<8x128xf32> -> vector<8x128xf32>
    %c0_21 = arith.constant 0 : index
    %c0_22 = arith.constant 0 : index
    %27 = vector.load %arg10[%c0_21, %c0_22] : memref<1x128xf32, #tpu.memory_space<vmem>>, vector<1x128xf32>
    %28 = vector.broadcast %27 : vector<1x128xf32> to vector<8x128xf32>
    %29 = arith.addf %26, %28 : vector<8x128xf32>
    %30 = vector.extract_strided_slice %29 {offsets = [0, 0], sizes = [8, 12], strides = [1, 1]} : vector<8x128xf32> to vector<8x12xf32>
    %31 = vector.extract_strided_slice %29 {offsets = [0, 12], sizes = [8, 12], strides = [1, 1]} : vector<8x128xf32> to vector<8x12xf32>
    %c0_23 = arith.constant 0 : index
    %c0_24 = arith.constant 0 : index
    %32 = vector.load %arg2[%c0_23, %c0_24] : memref<8x12xf32, #tpu.memory_space<vmem>>, vector<8x12xf32>
    %cst_25 = arith.constant 5.000000e-01 : f32
    %33 = vector.broadcast %cst_25 : f32 to vector<8x12xf32>
    %34 = arith.mulf %33, %31 : vector<8x12xf32>
    %35 = math.exp %34 : vector<8x12xf32>
    %36 = arith.mulf %32, %35 : vector<8x12xf32>
    %37 = arith.addf %30, %36 : vector<8x12xf32>
    %38 = arith.truncf %37 : vector<8x12xf32> to vector<8x12xbf16>
    %c0_26 = arith.constant 0 : index
    %c0_27 = arith.constant 0 : index
    %39 = vector.load %arg11[%c0_26, %c0_27] : memref<12x128xbf16, #tpu.memory_space<vmem>>, vector<12x128xbf16>
    %cst_28 = arith.constant dense<0.000000e+00> : vector<8x128xf32>
    %40 = tpu.matmul %38, %39, %cst_28 {dimension_numbers = #tpu.dot_dimension_numbers<[1], [0], [0], [1], [0, 0, 1, 1], [], []>} : vector<8x12xbf16>, vector<12x128xbf16>, vector<8x128xf32> -> vector<8x128xf32>
    %c0_29 = arith.constant 0 : index
    %c0_30 = arith.constant 0 : index
    %41 = vector.load %arg12[%c0_29, %c0_30] : memref<1x128xf32, #tpu.memory_space<vmem>>, vector<1x128xf32>
    %42 = vector.broadcast %41 : vector<1x128xf32> to vector<8x128xf32>
    %43 = arith.addf %40, %42 : vector<8x128xf32>
    %cst_31 = arith.constant 0.000000e+00 : f32
    %44 = vector.broadcast %cst_31 : f32 to vector<8x128xf32>
    %45 = arith.maximumf %43, %44 : vector<8x128xf32>
    %46 = arith.truncf %45 : vector<8x128xf32> to vector<8x128xbf16>
    %c0_32 = arith.constant 0 : index
    %c0_33 = arith.constant 0 : index
    %47 = vector.load %arg13[%c0_32, %c0_33] : memref<128x256xbf16, #tpu.memory_space<vmem>>, vector<128x256xbf16>
    %cst_34 = arith.constant dense<0.000000e+00> : vector<8x256xf32>
    %48 = tpu.matmul %46, %47, %cst_34 {dimension_numbers = #tpu.dot_dimension_numbers<[1], [0], [0], [1], [0, 0, 1, 1], [], []>} : vector<8x128xbf16>, vector<128x256xbf16>, vector<8x256xf32> -> vector<8x256xf32>
    %c0_35 = arith.constant 0 : index
    %c0_36 = arith.constant 0 : index
    %49 = vector.load %arg14[%c0_35, %c0_36] : memref<1x256xf32, #tpu.memory_space<vmem>>, vector<1x256xf32>
    %50 = vector.broadcast %49 : vector<1x256xf32> to vector<8x256xf32>
    %51 = arith.addf %48, %50 : vector<8x256xf32>
    %cst_37 = arith.constant 0.000000e+00 : f32
    %52 = vector.broadcast %cst_37 : f32 to vector<8x256xf32>
    %53 = arith.maximumf %51, %52 : vector<8x256xf32>
    %54 = arith.truncf %53 : vector<8x256xf32> to vector<8x256xbf16>
    %c0_38 = arith.constant 0 : index
    %c0_39 = arith.constant 0 : index
    %55 = vector.load %arg15[%c0_38, %c0_39] : memref<256x512xbf16, #tpu.memory_space<vmem>>, vector<256x512xbf16>
    %cst_40 = arith.constant dense<0.000000e+00> : vector<8x512xf32>
    %56 = tpu.matmul %54, %55, %cst_40 {dimension_numbers = #tpu.dot_dimension_numbers<[1], [0], [0], [1], [0, 0, 1, 1], [], []>} : vector<8x256xbf16>, vector<256x512xbf16>, vector<8x512xf32> -> vector<8x512xf32>
    %c0_41 = arith.constant 0 : index
    %c0_42 = arith.constant 0 : index
    %57 = vector.load %arg16[%c0_41, %c0_42] : memref<1x512xf32, #tpu.memory_space<vmem>>, vector<1x512xf32>
    %58 = vector.broadcast %57 : vector<1x512xf32> to vector<8x512xf32>
    %59 = arith.addf %56, %58 : vector<8x512xf32>
    %cst_43 = arith.constant 0.000000e+00 : f32
    %60 = vector.broadcast %cst_43 : f32 to vector<8x512xf32>
    %61 = arith.maximumf %59, %60 : vector<8x512xf32>
    %62 = arith.truncf %61 : vector<8x512xf32> to vector<8x512xbf16>
    %c0_44 = arith.constant 0 : index
    %c0_45 = arith.constant 0 : index
    %63 = vector.load %arg17[%c0_44, %c0_45] : memref<512x128xbf16, #tpu.memory_space<vmem>>, vector<512x128xbf16>
    %cst_46 = arith.constant dense<0.000000e+00> : vector<8x128xf32>
    %64 = tpu.matmul %62, %63, %cst_46 {dimension_numbers = #tpu.dot_dimension_numbers<[1], [0], [0], [1], [0, 0, 1, 1], [], []>} : vector<8x512xbf16>, vector<512x128xbf16>, vector<8x128xf32> -> vector<8x128xf32>
    %c0_47 = arith.constant 0 : index
    %c0_48 = arith.constant 0 : index
    %65 = vector.load %arg18[%c0_47, %c0_48] : memref<1x128xf32, #tpu.memory_space<vmem>>, vector<1x128xf32>
    %66 = vector.broadcast %65 : vector<1x128xf32> to vector<8x128xf32>
    %67 = arith.addf %64, %66 : vector<8x128xf32>
    %68 = arith.addf %29, %67 : vector<8x128xf32>
    %c0_49 = arith.constant 0 : index
    %c0_50 = arith.constant 0 : index
    %69 = vector.load %arg19[%c0_49, %c0_50] : memref<8x128xf32, #tpu.memory_space<vmem>>, vector<8x128xf32>
    tpu.vector_store %arg19[%c0_49, %c0_50], %68 {strides = array<i32>} : memref<8x128xf32, #tpu.memory_space<vmem>>, vector<8x128xf32>,
    return
  }
  func.func @transform_0(%arg0: i32) -> (i32, i32) {
    %c0_i32 = arith.constant 0 : i32
    %c0_i32_0 = arith.constant 0 : i32
    return %arg0, %c0_i32 : i32, i32
  }
  func.func @transform_1(%arg0: i32) -> (i32, i32) {
    %c0_i32 = arith.constant 0 : i32
    %c0_i32_0 = arith.constant 0 : i32
    return %arg0, %c0_i32 : i32, i32
  }
  func.func @transform_2(%arg0: i32) -> (i32, i32) {
    %c0_i32 = arith.constant 0 : i32
    %c0_i32_0 = arith.constant 0 : i32
    %c0_i32_1 = arith.constant 0 : i32
    return %c0_i32, %c0_i32_0 : i32, i32
  }
  func.func @transform_3(%arg0: i32) -> (i32, i32) {
    %c0_i32 = arith.constant 0 : i32
    %c0_i32_0 = arith.constant 0 : i32
    %c0_i32_1 = arith.constant 0 : i32
    return %c0_i32, %c0_i32_0 : i32, i32
  }
  func.func @transform_4(%arg0: i32) -> (i32, i32) {
    %c0_i32 = arith.constant 0 : i32
    %c0_i32_0 = arith.constant 0 : i32
    %c0_i32_1 = arith.constant 0 : i32
    return %c0_i32, %c0_i32_0 : i32, i32
  }
  func.func @transform_5(%arg0: i32) -> (i32, i32) {
    %c0_i32 = arith.constant 0 : i32
    %c0_i32_0 = arith.constant 0 : i32
    %c0_i32_1 = arith.constant 0 : i32
    return %c0_i32, %c0_i32_0 : i32, i32
  }
  func.func @transform_6(%arg0: i32) -> (i32, i32) {
    %c0_i32 = arith.constant 0 : i32
    %c0_i32_0 = arith.constant 0 : i32
    %c0_i32_1 = arith.constant 0 : i32
    return %c0_i32, %c0_i32_0 : i32, i32
  }
  func.func @transform_7(%arg0: i32) -> (i32, i32) {
    %c0_i32 = arith.constant 0 : i32
    %c0_i32_0 = arith.constant 0 : i32
    %c0_i32_1 = arith.constant 0 : i32
    return %c0_i32, %c0_i32_0 : i32, i32
  }
  func.func @transform_8(%arg0: i32) -> (i32, i32) {
    %c0_i32 = arith.constant 0 : i32
    %c0_i32_0 = arith.constant 0 : i32
    %c0_i32_1 = arith.constant 0 : i32
    return %c0_i32, %c0_i32_0 : i32, i32
  }
  func.func @transform_9(%arg0: i32) -> (i32, i32) {
    %c0_i32 = arith.constant 0 : i32
    %c0_i32_0 = arith.constant 0 : i32
    %c0_i32_1 = arith.constant 0 : i32
    return %c0_i32, %c0_i32_0 : i32, i32
  }
  func.func @transform_10(%arg0: i32) -> (i32, i32) {
    %c0_i32 = arith.constant 0 : i32
    %c0_i32_0 = arith.constant 0 : i32
    %c0_i32_1 = arith.constant 0 : i32
    return %c0_i32, %c0_i32_0 : i32, i32
  }
  func.func @transform_11(%arg0: i32) -> (i32, i32) {
    %c0_i32 = arith.constant 0 : i32
    %c0_i32_0 = arith.constant 0 : i32
    %c0_i32_1 = arith.constant 0 : i32
    return %c0_i32, %c0_i32_0 : i32, i32
  }
  func.func @transform_12(%arg0: i32) -> (i32, i32) {
    %c0_i32 = arith.constant 0 : i32
    %c0_i32_0 = arith.constant 0 : i32
    %c0_i32_1 = arith.constant 0 : i32
    return %c0_i32, %c0_i32_0 : i32, i32
  }
  func.func @transform_13(%arg0: i32) -> (i32, i32) {
    %c0_i32 = arith.constant 0 : i32
    %c0_i32_0 = arith.constant 0 : i32
    %c0_i32_1 = arith.constant 0 : i32
    return %c0_i32, %c0_i32_0 : i32, i32
  }
  func.func @transform_14(%arg0: i32) -> (i32, i32) {
    %c0_i32 = arith.constant 0 : i32
    %c0_i32_0 = arith.constant 0 : i32
    %c0_i32_1 = arith.constant 0 : i32
    return %c0_i32, %c0_i32_0 : i32, i32
  }
  func.func @transform_15(%arg0: i32) -> (i32, i32) {
    %c0_i32 = arith.constant 0 : i32
    %c0_i32_0 = arith.constant 0 : i32
    %c0_i32_1 = arith.constant 0 : i32
    return %c0_i32, %c0_i32_0 : i32, i32
  }
  func.func @transform_16(%arg0: i32) -> (i32, i32) {
    %c0_i32 = arith.constant 0 : i32
    %c0_i32_0 = arith.constant 0 : i32
    %c0_i32_1 = arith.constant 0 : i32
    return %c0_i32, %c0_i32_0 : i32, i32
  }
  func.func @transform_17(%arg0: i32) -> (i32, i32) {
    %c0_i32 = arith.constant 0 : i32
    %c0_i32_0 = arith.constant 0 : i32
    %c0_i32_1 = arith.constant 0 : i32
    return %c0_i32, %c0_i32_0 : i32, i32
  }
  func.func @transform_18(%arg0: i32) -> (i32, i32) {
    %c0_i32 = arith.constant 0 : i32
    %c0_i32_0 = arith.constant 0 : i32
    return %arg0, %c0_i32 : i32, i32
  }
}

</mosaic_0001>

<llo_original>
// kernel: vae_forward.1
$region0: #{vae_forward.1}
  #allocation0 [shape = 'u32[]', space=smem, size = 0x4, offset = 0x4, fixed_abs, tag = 'smem constant byte address 0x4 - core index']
  #allocation1 [shape = 'u32[144,128]{1,0:T(1,128)}', space=vmem, size = 0x12000, scoped, tag = 'internal scratch']
  %s0 = inlined_call_operand.vmem [shape: f32[8,4], index: 0, kind: input, shape index: {}]
  %s1 = inlined_call_operand.vmem [shape: f32[8,12], index: 1, kind: input, shape index: {}]
  %s2 = inlined_call_operand.vmem [shape: bf16[4,512], index: 2, kind: input, shape index: {}]
  %s3 = inlined_call_operand.vmem [shape: f32[1,512], index: 3, kind: input, shape index: {}]
  %s4 = inlined_call_operand.vmem [shape: bf16[512,256], index: 4, kind: input, shape index: {}]
  %s5 = inlined_call_operand.vmem [shape: f32[1,256], index: 5, kind: input, shape index: {}]
  %s6 = inlined_call_operand.vmem [shape: bf16[256,128], index: 6, kind: input, shape index: {}]
  %s7 = inlined_call_operand.vmem [shape: f32[1,128], index: 7, kind: input, shape index: {}]
  %s8 = inlined_call_operand.vmem [shape: f32[128,128], index: 8, kind: input, shape index: {}]
  %s9 = inlined_call_operand.vmem [shape: f32[1,128], index: 9, kind: input, shape index: {}]
  %s10 = inlined_call_operand.vmem [shape: bf16[12,128], index: 10, kind: input, shape index: {}]
  %s11 = inlined_call_operand.vmem [shape: f32[1,128], index: 11, kind: input, shape index: {}]
  %s12 = inlined_call_operand.vmem [shape: bf16[128,256], index: 12, kind: input, shape index: {}]
  %s13 = inlined_call_operand.vmem [shape: f32[1,256], index: 13, kind: input, shape index: {}]
  %s14 = inlined_call_operand.vmem [shape: bf16[256,512], index: 14, kind: input, shape index: {}]
  %s15 = inlined_call_operand.vmem [shape: f32[1,512], index: 15, kind: input, shape index: {}]
  %s16 = inlined_call_operand.vmem [shape: bf16[512,128], index: 16, kind: input, shape index: {}]
  %s17 = inlined_call_operand.vmem [shape: f32[1,128], index: 17, kind: input, shape index: {}]
  %s18 = inlined_call_operand.vmem [shape: f32[8,128], index: 18, kind: output, shape index: {}]
  %s19 = sld [smem:[#allocation0]]
  $region82: #{vae_forward.1} parent=0
    _
  %s21 = ssub.s32 1, %s19
  %s22 = scalar_select 0, %s21, %s19
  // Predicated region
  $region2: #{vae_forward.1} parent=0 // pred_check
    _
  $region3: #{vae_forward.1} parent=0 // pred_check_branch
    %24 = sbr.rel (0) target = $region5
  $region4: #{vae_forward.1} parent=0 // pred_region
    _
  $region5: #{vae_forward.1} parent=0 // pred_fallthru
    _
  // Predicated region
  $region6: #{vae_forward.1} parent=0 // pred_check
    _
  $region7: #{vae_forward.1} parent=0 // pred_check_branch
    %26 = sbr.rel (0) target = $region9
  $region8: #{vae_forward.1} parent=0 // pred_region
    _
  $region9: #{vae_forward.1} parent=0 // pred_fallthru
    _
  // Predicated region
  $region10: #{vae_forward.1} parent=0 // pred_check
    _
  $region11: #{vae_forward.1} parent=0 // pred_check_branch
    %28 = sbr.rel (0) target = $region13
  $region12: #{vae_forward.1} parent=0 // pred_region
    _
  $region13: #{vae_forward.1} parent=0 // pred_fallthru
    _
  // Predicated region
  $region14: #{vae_forward.1} parent=0 // pred_check
    _
  $region15: #{vae_forward.1} parent=0 // pred_check_branch
    %30 = sbr.rel (0) target = $region17
  $region16: #{vae_forward.1} parent=0 // pred_region
    _
  $region17: #{vae_forward.1} parent=0 // pred_fallthru
    _
  // Predicated region
  $region18: #{vae_forward.1} parent=0 // pred_check
    _
  $region19: #{vae_forward.1} parent=0 // pred_check_branch
    %32 = sbr.rel (0) target = $region21
  $region20: #{vae_forward.1} parent=0 // pred_region
    _
  $region21: #{vae_forward.1} parent=0 // pred_fallthru
    _
  // Predicated region
  $region22: #{vae_forward.1} parent=0 // pred_check
    _
  $region23: #{vae_forward.1} parent=0 // pred_check_branch
    %34 = sbr.rel (0) target = $region25
  $region24: #{vae_forward.1} parent=0 // pred_region
    _
  $region25: #{vae_forward.1} parent=0 // pred_fallthru
    _
  // Predicated region
  $region26: #{vae_forward.1} parent=0 // pred_check
    _
  $region27: #{vae_forward.1} parent=0 // pred_check_branch
    %36 = sbr.rel (0) target = $region29
  $region28: #{vae_forward.1} parent=0 // pred_region
    _
  $region29: #{vae_forward.1} parent=0 // pred_fallthru
    _
  // Predicated region
  $region30: #{vae_forward.1} parent=0 // pred_check
    _
  $region31: #{vae_forward.1} parent=0 // pred_check_branch
    %38 = sbr.rel (0) target = $region33
  $region32: #{vae_forward.1} parent=0 // pred_region
    _
  $region33: #{vae_forward.1} parent=0 // pred_fallthru
    _
  // Predicated region
  $region34: #{vae_forward.1} parent=0 // pred_check
    _
  $region35: #{vae_forward.1} parent=0 // pred_check_branch
    %40 = sbr.rel (0) target = $region37
  $region36: #{vae_forward.1} parent=0 // pred_region
    _
  $region37: #{vae_forward.1} parent=0 // pred_fallthru
    _
  // Predicated region
  $region38: #{vae_forward.1} parent=0 // pred_check
    _
  $region39: #{vae_forward.1} parent=0 // pred_check_branch
    %42 = sbr.rel (0) target = $region41
  $region40: #{vae_forward.1} parent=0 // pred_region
    _
  $region41: #{vae_forward.1} parent=0 // pred_fallthru
    _
  // Predicated region
  $region42: #{vae_forward.1} parent=0 // pred_check
    _
  $region43: #{vae_forward.1} parent=0 // pred_check_branch
    %44 = sbr.rel (0) target = $region45
  $region44: #{vae_forward.1} parent=0 // pred_region
    _
  $region45: #{vae_forward.1} parent=0 // pred_fallthru
    _
  // Predicated region
  $region46: #{vae_forward.1} parent=0 // pred_check
    _
  $region47: #{vae_forward.1} parent=0 // pred_check_branch
    %46 = sbr.rel (0) target = $region49
  $region48: #{vae_forward.1} parent=0 // pred_region
    _
  $region49: #{vae_forward.1} parent=0 // pred_fallthru
    _
  // Predicated region
  $region50: #{vae_forward.1} parent=0 // pred_check
    _
  $region51: #{vae_forward.1} parent=0 // pred_check_branch
    %48 = sbr.rel (0) target = $region53
  $region52: #{vae_forward.1} parent=0 // pred_region
    _
  $region53: #{vae_forward.1} parent=0 // pred_fallthru
    _
  // Predicated region
  $region54: #{vae_forward.1} parent=0 // pred_check
    _
  $region55: #{vae_forward.1} parent=0 // pred_check_branch
    %50 = sbr.rel (0) target = $region57
  $region56: #{vae_forward.1} parent=0 // pred_region
    _
  $region57: #{vae_forward.1} parent=0 // pred_fallthru
    _
  // Predicated region
  $region58: #{vae_forward.1} parent=0 // pred_check
    _
  $region59: #{vae_forward.1} parent=0 // pred_check_branch
    %52 = sbr.rel (0) target = $region61
  $region60: #{vae_forward.1} parent=0 // pred_region
    _
  $region61: #{vae_forward.1} parent=0 // pred_fallthru
    _
  // Predicated region
  $region62: #{vae_forward.1} parent=0 // pred_check
    _
  $region63: #{vae_forward.1} parent=0 // pred_check_branch
    %54 = sbr.rel (0) target = $region65
  $region64: #{vae_forward.1} parent=0 // pred_region
    _
  $region65: #{vae_forward.1} parent=0 // pred_fallthru
    _
  // Predicated region
  $region66: #{vae_forward.1} parent=0 // pred_check
    _
  $region67: #{vae_forward.1} parent=0 // pred_check_branch
    %56 = sbr.rel (0) target = $region69
  $region68: #{vae_forward.1} parent=0 // pred_region
    _
  $region69: #{vae_forward.1} parent=0 // pred_fallthru
    _
  // Predicated region
  $region70: #{vae_forward.1} parent=0 // pred_check
    _
  $region71: #{vae_forward.1} parent=0 // pred_check_branch
    %58 = sbr.rel (0) target = $region73
  $region72: #{vae_forward.1} parent=0 // pred_region
    _
  $region73: #{vae_forward.1} parent=0 // pred_fallthru
    _
  %v60 = vld [vmem:[%s0] sm:$0xff]
  %v61 = vpack.c.bf16 %v60, %v60
  %v62 = vld [vmem:[%s2] sm:$0xff]
  %v63 = vld [vmem:[%s3] sm:$0xf]
  %v65 = vlaneseq
  %v66 = vshrl.u32 %v65, 7
  %v67 = vsub.s32 0, %v66
  %v68 = vrot.slane %v63, %v67
  %v69 = vlaneseq
  %v70 = vshrl.u32 %v69, 7
  %v71 = vsub.s32 1, %v70
  %v72 = vrot.slane %v63, %v71
  %v73 = vlaneseq
  %v74 = vshrl.u32 %v73, 7
  %v75 = vsub.s32 2, %v74
  %v76 = vrot.slane %v63, %v75
  %v77 = vlaneseq
  %v78 = vshrl.u32 %v77, 7
  %v79 = vsub.s32 3, %v78
  %v80 = vrot.slane %v63, %v79
  %v86 = vcombine.high %v62, %v62
  %v88 = vunpack.c.l.s4 1983009808
  %v89 = vunpack.c.0.s8 %v88
  %v90 = vlaneseq
  %v91 = vshrl.u32 %v90, 7
  %v92 = vsub.s32 %v89, %v91
  %v93 = vrot.slane %v62, %v92
  %v95 = vunpack.c.l.s4 1983009808
  %v96 = vunpack.c.0.s8 %v95
  %v97 = vlaneseq
  %v98 = vshrl.u32 %v97, 7
  %v99 = vsub.s32 %v96, %v98
  %v100 = vrot.slane %v86, %v99
  %v101 = vcombine.high %v93, %v93
  %v102 = vcombine.high %v100, %v100
  %vm103 = vcmask 31744
  %v105 = vsel %vm103, %v61, 0
  %vm107 = vcmask 1041408
  %v109 = vsel %vm107, %v93, 0
  %v112 = vsel %vm107, %v101, 0
  %v115 = vsel %vm107, %v100, 0
  %v118 = vsel %vm107, %v102, 0
  %120 = vmatprep.subr.bf16.mxu0 %v112
  %121 = vmatpush1.bf16.msra.mxu0 %v109
  %122 = vmatprep.subr.bf16.mxu0 0
  %123 = vmatpush1.bf16.msra.mxu0 0
  %124 = vmatprep.subr.bf16.mxu0 0
  %125 = vmatpush1.bf16.msra.mxu0 0
  %126 = vmatprep.subr.bf16.mxu0 0
  %127 = vmatpush1.bf16.msra.mxu0 0
  %128 = vmatprep.subr.bf16.mxu0 0
  %129 = vmatpush1.bf16.msra.mxu0 0
  %130 = vmatprep.subr.bf16.mxu0 0
  %131 = vmatpush1.bf16.msra.mxu0 0
  %132 = vmatprep.subr.bf16.mxu0 0
  %133 = vmatpush1.bf16.msra.mxu0 0
  %134 = vmatprep.subr.bf16.mxu0 0
  %135 = vmatpush1.bf16.msra.mxu0 0
  %136 = vmatprep.subr.bf16.mxu0 0
  %137 = vmatpush1.bf16.msra.mxu0 0
  %138 = vmatprep.subr.bf16.mxu0 0
  %139 = vmatpush1.bf16.msra.mxu0 0
  %140 = vmatprep.subr.bf16.mxu0 0
  %141 = vmatpush1.bf16.msra.mxu0 0
  %142 = vmatprep.subr.bf16.mxu0 0
  %143 = vmatpush1.bf16.msra.mxu0 0
  %144 = vmatprep.subr.bf16.mxu0 0
  %145 = vmatpush1.bf16.msra.mxu0 0
  %146 = vmatprep.subr.bf16.mxu0 0
  %147 = vmatpush1.bf16.msra.mxu0 0
  %148 = vmatprep.subr.bf16.mxu0 0
  %149 = vmatpush1.bf16.msra.mxu0 0
  %150 = vmatprep.subr.bf16.mxu0 0
  %151 = vmatpush1.bf16.msra.mxu0 0
  %152 = vmatprep.mubr.bf16.mxu0 0
  %153 = vmatmul.mubr.bf16.gmra.mrb[0].mxu0 %v105
  %v154 = vpop.f32.mrb[0].mxu0
  %v155 = vadd.f32 %v68, %v154
  %v156 = vpop.f32.mrb[0].mxu0
  %v157 = vadd.f32 %v72, %v156
  %v158 = vpop.f32.mrb[0].mxu0
  %v159 = vpop.f32.mrb[0].mxu0
  %160 = vdwg.mxu0
  %161 = vmatprep.subr.bf16.mxu0 %v118
  %162 = vmatpush1.bf16.msra.mxu0 %v115
  %163 = vmatprep.subr.bf16.mxu0 0
  %164 = vmatpush1.bf16.msra.mxu0 0
  %165 = vmatprep.subr.bf16.mxu0 0
  %166 = vmatpush1.bf16.msra.mxu0 0
  %167 = vmatprep.subr.bf16.mxu0 0
  %168 = vmatpush1.bf16.msra.mxu0 0
  %169 = vmatprep.subr.bf16.mxu0 0
  %170 = vmatpush1.bf16.msra.mxu0 0
  %171 = vmatprep.subr.bf16.mxu0 0
  %172 = vmatpush1.bf16.msra.mxu0 0
  %173 = vmatprep.subr.bf16.mxu0 0
  %174 = vmatpush1.bf16.msra.mxu0 0
  %175 = vmatprep.subr.bf16.mxu0 0
  %176 = vmatpush1.bf16.msra.mxu0 0
  %177 = vmatprep.subr.bf16.mxu0 0
  %178 = vmatpush1.bf16.msra.mxu0 0
  %179 = vmatprep.subr.bf16.mxu0 0
  %180 = vmatpush1.bf16.msra.mxu0 0
  %181 = vmatprep.subr.bf16.mxu0 0
  %182 = vmatpush1.bf16.msra.mxu0 0
  %183 = vmatprep.subr.bf16.mxu0 0
  %184 = vmatpush1.bf16.msra.mxu0 0
  %185 = vmatprep.subr.bf16.mxu0 0
  %186 = vmatpush1.bf16.msra.mxu0 0
  %187 = vmatprep.subr.bf16.mxu0 0
  %188 = vmatpush1.bf16.msra.mxu0 0
  %189 = vmatprep.subr.bf16.mxu0 0
  %190 = vmatpush1.bf16.msra.mxu0 0
  %191 = vmatprep.subr.bf16.mxu0 0
  %192 = vmatpush1.bf16.msra.mxu0 0
  %193 = vmatprep.mubr.bf16.mxu0 0
  %194 = vmatmul.mubr.bf16.gmra.mrb[0].mxu0 %v105
  %v195 = vpop.f32.mrb[0].mxu0
  %v196 = vadd.f32 %v76, %v195
  %v197 = vpop.f32.mrb[0].mxu0
  %v198 = vadd.f32 %v80, %v197
  %v199 = vpop.f32.mrb[0].mxu0
  %v200 = vpop.f32.mrb[0].mxu0
  %201 = vdwg.mxu0
  %v202 = vmax.f32 %v155, 0.0
  %v203 = vmax.f32 %v157, 0.0
  %v204 = vmax.f32 %v196, 0.0
  %v205 = vmax.f32 %v198, 0.0
  %v206 = vpack.c.bf16 %v202, %v202
  %v207 = vpack.c.bf16 %v203, %v203
  %v208 = vpack.c.bf16 %v204, %v204
  %v209 = vpack.c.bf16 %v205, %v205
  %v210 = vld [vmem:[%s4] sm:$0xff]
  %v211 = vld [vmem:[%s4 + $0x8] sm:$0xff]
  %v212 = vld [vmem:[%s4 + $0x10] sm:$0xff]
  %v213 = vld [vmem:[%s4 + $0x18] sm:$0xff]
  %v214 = vld [vmem:[%s4 + $0x20] sm:$0xff]
  %v215 = vld [vmem:[%s4 + $0x28] sm:$0xff]
  %v216 = vld [vmem:[%s4 + $0x30] sm:$0xff]
  %v217 = vld [vmem:[%s4 + $0x38] sm:$0xff]
  %v218 = vld [vmem:[%s4 + $0x40] sm:$0xff]
  %v219 = vld [vmem:[%s4 + $0x48] sm:$0xff]
  %v220 = vld [vmem:[%s4 + $0x50] sm:$0xff]
  %v221 = vld [vmem:[%s4 + $0x58] sm:$0xff]
  %v222 = vld [vmem:[%s4 + $0x60] sm:$0xff]
  %v223 = vld [vmem:[%s4 + $0x68] sm:$0xff]
  %v224 = vld [vmem:[%s4 + $0x70] sm:$0xff]
  %v225 = vld [vmem:[%s4 + $0x78] sm:$0xff]
  %v226 = vld [vmem:[%s4 + $0x80] sm:$0xff]
  %v227 = vld [vmem:[%s4 + $0x88] sm:$0xff]
  %v228 = vld [vmem:[%s4 + $0x90] sm:$0xff]
  %v229 = vld [vmem:[%s4 + $0x98] sm:$0xff]
  %v230 = vld [vmem:[%s4 + $0xa0] sm:$0xff]
  %v231 = vld [vmem:[%s4 + $0xa8] sm:$0xff]
  %v232 = vld [vmem:[%s4 + $0xb0] sm:$0xff]
  %v233 = vld [vmem:[%s4 + $0xb8] sm:$0xff]
  %v234 = vld [vmem:[%s4 + $0xc0] sm:$0xff]
  %v235 = vld [vmem:[%s4 + $0xc8] sm:$0xff]
  %v236 = vld [vmem:[%s4 + $0xd0] sm:$0xff]
  %v237 = vld [vmem:[%s4 + $0xd8] sm:$0xff]
  %v238 = vld [vmem:[%s4 + $0xe0] sm:$0xff]
  %v239 = vld [vmem:[%s4 + $0xe8] sm:$0xff]
  %v240 = vld [vmem:[%s4 + $0xf0] sm:$0xff]
  %v241 = vld [vmem:[%s4 + $0xf8] sm:$0xff]
  %v242 = vld [vmem:[%s4 + $0x100] sm:$0xff]
  %v243 = vld [vmem:[%s4 + $0x108] sm:$0xff]
  %v244 = vld [vmem:[%s4 + $0x110] sm:$0xff]
  %v245 = vld [vmem:[%s4 + $0x118] sm:$0xff]
  %v246 = vld [vmem:[%s4 + $0x120] sm:$0xff]
  %v247 = vld [vmem:[%s4 + $0x128] sm:$0xff]
  %v248 = vld [vmem:[%s4 + $0x130] sm:$0xff]
  %v249 = vld [vmem:[%s4 + $0x138] sm:$0xff]
  %v250 = vld [vmem:[%s4 + $0x140] sm:$0xff]
  %v251 = vld [vmem:[%s4 + $0x148] sm:$0xff]
  %v252 = vld [vmem:[%s4 + $0x150] sm:$0xff]
  %v253 = vld [vmem:[%s4 + $0x158] sm:$0xff]
  %v254 = vld [vmem:[%s4 + $0x160] sm:$0xff]
  %v255 = vld [vmem:[%s4 + $0x168] sm:$0xff]
  %v256 = vld [vmem:[%s4 + $0x170] sm:$0xff]
  %v257 = vld [vmem:[%s4 + $0x178] sm:$0xff]
  %v258 = vld [vmem:[%s4 + $0x180] sm:$0xff]
  %v259 = vld [vmem:[%s4 + $0x188] sm:$0xff]
  %v260 = vld [vmem:[%s4 + $0x190] sm:$0xff]
  %v261 = vld [vmem:[%s4 + $0x198] sm:$0xff]
  %v262 = vld [vmem:[%s4 + $0x1a0] sm:$0xff]
  %v263 = vld [vmem:[%s4 + $0x1a8] sm:$0xff]
  %v264 = vld [vmem:[%s4 + $0x1b0] sm:$0xff]
  %v265 = vld [vmem:[%s4 + $0x1b8] sm:$0xff]
  %v266 = vld [vmem:[%s4 + $0x1c0] sm:$0xff]
  %v267 = vld [vmem:[%s4 + $0x1c8] sm:$0xff]
  %v268 = vld [vmem:[%s4 + $0x1d0] sm:$0xff]
  %v269 = vld [vmem:[%s4 + $0x1d8] sm:$0xff]
  %v270 = vld [vmem:[%s4 + $0x1e0] sm:$0xff]
  %v271 = vld [vmem:[%s4 + $0x1e8] sm:$0xff]
  %v272 = vld [vmem:[%s4 + $0x1f0] sm:$0xff]
  %v273 = vld [vmem:[%s4 + $0x1f8] sm:$0xff]
  %v274 = vld [vmem:[%s5] sm:$0x3]
  %v276 = vlaneseq
  %v277 = vshrl.u32 %v276, 7
  %v278 = vsub.s32 0, %v277
  %v279 = vrot.slane %v274, %v278
  %v280 = vlaneseq
  %v281 = vshrl.u32 %v280, 7
  %v282 = vsub.s32 1, %v281
  %v283 = vrot.slane %v274, %v282
  %v350 = vunpack.c.l.b16 %v210
  %v351 = vunpack.c.h.b16 %v210
  %v352 = vunpack.c.l.b16 %v211
  %v353 = vunpack.c.h.b16 %v211
  %v354 = vunpack.c.l.b16 %v212
  %v355 = vunpack.c.h.b16 %v212
  %v356 = vunpack.c.l.b16 %v213
  %v357 = vunpack.c.h.b16 %v213
  %v358 = vunpack.c.l.b16 %v214
  %v359 = vunpack.c.h.b16 %v214
  %v360 = vunpack.c.l.b16 %v215
  %v361 = vunpack.c.h.b16 %v215
  %v362 = vunpack.c.l.b16 %v216
  %v363 = vunpack.c.h.b16 %v216
  %v364 = vunpack.c.l.b16 %v217
  %v365 = vunpack.c.h.b16 %v217
  %v366 = vunpack.c.l.b16 %v218
  %v367 = vunpack.c.h.b16 %v218
  %v368 = vunpack.c.l.b16 %v219
  %v369 = vunpack.c.h.b16 %v219
  %v370 = vunpack.c.l.b16 %v220
  %v371 = vunpack.c.h.b16 %v220
  %v372 = vunpack.c.l.b16 %v221
  %v373 = vunpack.c.h.b16 %v221
  %v374 = vunpack.c.l.b16 %v222
  %v375 = vunpack.c.h.b16 %v222
  %v376 = vunpack.c.l.b16 %v223
  %v377 = vunpack.c.h.b16 %v223
  %v378 = vunpack.c.l.b16 %v224
  %v379 = vunpack.c.h.b16 %v224
  %v380 = vunpack.c.l.b16 %v225
  %v381 = vunpack.c.h.b16 %v225
  %v382 = vunpack.c.l.b16 %v226
  %v383 = vunpack.c.h.b16 %v226
  %v384 = vunpack.c.l.b16 %v227
  %v385 = vunpack.c.h.b16 %v227
  %v386 = vunpack.c.l.b16 %v228
  %v387 = vunpack.c.h.b16 %v228
  %v388 = vunpack.c.l.b16 %v229
  %v389 = vunpack.c.h.b16 %v229
  %v390 = vunpack.c.l.b16 %v230
  %v391 = vunpack.c.h.b16 %v230
  %v392 = vunpack.c.l.b16 %v231
  %v393 = vunpack.c.h.b16 %v231
  %v394 = vunpack.c.l.b16 %v232
  %v395 = vunpack.c.h.b16 %v232
  %v396 = vunpack.c.l.b16 %v233
  %v397 = vunpack.c.h.b16 %v233
  %v398 = vunpack.c.l.b16 %v234
  %v399 = vunpack.c.h.b16 %v234
  %v400 = vunpack.c.l.b16 %v235
  %v401 = vunpack.c.h.b16 %v235
  %v402 = vunpack.c.l.b16 %v236
  %v403 = vunpack.c.h.b16 %v236
  %v404 = vunpack.c.l.b16 %v237
  %v405 = vunpack.c.h.b16 %v237
  %v406 = vunpack.c.l.b16 %v238
  %v407 = vunpack.c.h.b16 %v238
  %v408 = vunpack.c.l.b16 %v239
  %v409 = vunpack.c.h.b16 %v239
  %v410 = vunpack.c.l.b16 %v240
  %v411 = vunpack.c.h.b16 %v240
  %v412 = vunpack.c.l.b16 %v241
  %v413 = vunpack.c.h.b16 %v241
  %v414 = vunpack.c.l.b16 %v242
  %v415 = vunpack.c.h.b16 %v242
  %v416 = vunpack.c.l.b16 %v243
  %v417 = vunpack.c.h.b16 %v243
  %v418 = vunpack.c.l.b16 %v244
  %v419 = vunpack.c.h.b16 %v244
  %v420 = vunpack.c.l.b16 %v245
  %v421 = vunpack.c.h.b16 %v245
  %v422 = vunpack.c.l.b16 %v246
  %v423 = vunpack.c.h.b16 %v246
  %v424 = vunpack.c.l.b16 %v247
  %v425 = vunpack.c.h.b16 %v247
  %v426 = vunpack.c.l.b16 %v248
  %v427 = vunpack.c.h.b16 %v248
  %v428 = vunpack.c.l.b16 %v249
  %v429 = vunpack.c.h.b16 %v249
  %v430 = vunpack.c.l.b16 %v250
  %v431 = vunpack.c.h.b16 %v250
  %v432 = vunpack.c.l.b16 %v251
  %v433 = vunpack.c.h.b16 %v251
  %v434 = vunpack.c.l.b16 %v252
  %v435 = vunpack.c.h.b16 %v252
  %v436 = vunpack.c.l.b16 %v253
  %v437 = vunpack.c.h.b16 %v253
  %v438 = vunpack.c.l.b16 %v254
  %v439 = vunpack.c.h.b16 %v254
  %v440 = vunpack.c.l.b16 %v255
  %v441 = vunpack.c.h.b16 %v255
  %v442 = vunpack.c.l.b16 %v256
  %v443 = vunpack.c.h.b16 %v256
  %v444 = vunpack.c.l.b16 %v257
  %v445 = vunpack.c.h.b16 %v257
  %v446 = vunpack.c.l.b16 %v258
  %v447 = vunpack.c.h.b16 %v258
  %v448 = vunpack.c.l.b16 %v259
  %v449 = vunpack.c.h.b16 %v259
  %v450 = vunpack.c.l.b16 %v260
  %v451 = vunpack.c.h.b16 %v260
  %v452 = vunpack.c.l.b16 %v261
  %v453 = vunpack.c.h.b16 %v261
  %v454 = vunpack.c.l.b16 %v262
  %v455 = vunpack.c.h.b16 %v262
  %v456 = vunpack.c.l.b16 %v263
  %v457 = vunpack.c.h.b16 %v263
  %v458 = vunpack.c.l.b16 %v264
  %v459 = vunpack.c.h.b16 %v264
  %v460 = vunpack.c.l.b16 %v265
  %v461 = vunpack.c.h.b16 %v265
  %v462 = vunpack.c.l.b16 %v266
  %v463 = vunpack.c.h.b16 %v266
  %v464 = vunpack.c.l.b16 %v267
  %v465 = vunpack.c.h.b16 %v267
  %v466 = vunpack.c.l.b16 %v268
  %v467 = vunpack.c.h.b16 %v268
  %v468 = vunpack.c.l.b16 %v269
  %v469 = vunpack.c.h.b16 %v269
  %v470 = vunpack.c.l.b16 %v270
  %v471 = vunpack.c.h.b16 %v270
  %v472 = vunpack.c.l.b16 %v271
  %v473 = vunpack.c.h.b16 %v271
  %v474 = vunpack.c.l.b16 %v272
  %v475 = vunpack.c.h.b16 %v272
  %v476 = vunpack.c.l.b16 %v273
  %v477 = vunpack.c.h.b16 %v273
  %v478 = vpack.c.b16 %v352, %v350
  %v479 = vpack.c.b16 %v353, %v351
  %v480 = vpack.c.b16 %v356, %v354
  %v481 = vpack.c.b16 %v357, %v355
  %v482 = vpack.c.b16 %v360, %v358
  %v483 = vpack.c.b16 %v361, %v359
  %v484 = vpack.c.b16 %v364, %v362
  %v485 = vpack.c.b16 %v365, %v363
  %v486 = vpack.c.b16 %v368, %v366
  %v487 = vpack.c.b16 %v369, %v367
  %v488 = vpack.c.b16 %v372, %v370
  %v489 = vpack.c.b16 %v373, %v371
  %v490 = vpack.c.b16 %v376, %v374
  %v491 = vpack.c.b16 %v377, %v375
  %v492 = vpack.c.b16 %v380, %v378
  %v493 = vpack.c.b16 %v381, %v379
  %v494 = vpack.c.b16 %v384, %v382
  %v495 = vpack.c.b16 %v385, %v383
  %v496 = vpack.c.b16 %v388, %v386
  %v497 = vpack.c.b16 %v389, %v387
  %v498 = vpack.c.b16 %v392, %v390
  %v499 = vpack.c.b16 %v393, %v391
  %v500 = vpack.c.b16 %v396, %v394
  %v501 = vpack.c.b16 %v397, %v395
  %v502 = vpack.c.b16 %v400, %v398
  %v503 = vpack.c.b16 %v401, %v399
  %v504 = vpack.c.b16 %v404, %v402
  %v505 = vpack.c.b16 %v405, %v403
  %v506 = vpack.c.b16 %v408, %v406
  %v507 = vpack.c.b16 %v409, %v407
  %v508 = vpack.c.b16 %v412, %v410
  %v509 = vpack.c.b16 %v413, %v411
  %v510 = vpack.c.b16 %v416, %v414
  %v511 = vpack.c.b16 %v417, %v415
  %v512 = vpack.c.b16 %v420, %v418
  %v513 = vpack.c.b16 %v421, %v419
  %v514 = vpack.c.b16 %v424, %v422
  %v515 = vpack.c.b16 %v425, %v423
  %v516 = vpack.c.b16 %v428, %v426
  %v517 = vpack.c.b16 %v429, %v427
  %v518 = vpack.c.b16 %v432, %v430
  %v519 = vpack.c.b16 %v433, %v431
  %v520 = vpack.c.b16 %v436, %v434
  %v521 = vpack.c.b16 %v437, %v435
  %v522 = vpack.c.b16 %v440, %v438
  %v523 = vpack.c.b16 %v441, %v439
  %v524 = vpack.c.b16 %v444, %v442
  %v525 = vpack.c.b16 %v445, %v443
  %v526 = vpack.c.b16 %v448, %v446
  %v527 = vpack.c.b16 %v449, %v447
  %v528 = vpack.c.b16 %v452, %v450
  %v529 = vpack.c.b16 %v453, %v451
  %v530 = vpack.c.b16 %v456, %v454
  %v531 = vpack.c.b16 %v457, %v455
  %v532 = vpack.c.b16 %v460, %v458
  %v533 = vpack.c.b16 %v461, %v459
  %v534 = vpack.c.b16 %v464, %v462
  %v535 = vpack.c.b16 %v465, %v463
  %v536 = vpack.c.b16 %v468, %v466
  %v537 = vpack.c.b16 %v469, %v467
  %v538 = vpack.c.b16 %v472, %v470
  %v539 = vpack.c.b16 %v473, %v471
  %v540 = vpack.c.b16 %v476, %v474
  %v541 = vpack.c.b16 %v477, %v475
  %606 = vmatprep.subr.bf16.mxu0 %v479
  %607 = vmatpush1.bf16.msra.mxu0 %v478
  %608 = vmatprep.subr.bf16.mxu0 %v481
  %609 = vmatpush1.bf16.msra.mxu0 %v480
  %610 = vmatprep.subr.bf16.mxu0 %v483
  %611 = vmatpush1.bf16.msra.mxu0 %v482
  %612 = vmatprep.subr.bf16.mxu0 %v485
  %613 = vmatpush1.bf16.msra.mxu0 %v484
  %614 = vmatprep.subr.bf16.mxu0 %v487
  %615 = vmatpush1.bf16.msra.mxu0 %v486
  %616 = vmatprep.subr.bf16.mxu0 %v489
  %617 = vmatpush1.bf16.msra.mxu0 %v488
  %618 = vmatprep.subr.bf16.mxu0 %v491
  %619 = vmatpush1.bf16.msra.mxu0 %v490
  %620 = vmatprep.subr.bf16.mxu0 %v493
  %621 = vmatpush1.bf16.msra.mxu0 %v492
  %622 = vmatprep.subr.bf16.mxu0 %v495
  %623 = vmatpush1.bf16.msra.mxu0 %v494
  %624 = vmatprep.subr.bf16.mxu0 %v497
  %625 = vmatpush1.bf16.msra.mxu0 %v496
  %626 = vmatprep.subr.bf16.mxu0 %v499
  %627 = vmatpush1.bf16.msra.mxu0 %v498
  %628 = vmatprep.subr.bf16.mxu0 %v501
  %629 = vmatpush1.bf16.msra.mxu0 %v500
  %630 = vmatprep.subr.bf16.mxu0 %v503
  %631 = vmatpush1.bf16.msra.mxu0 %v502
  %632 = vmatprep.subr.bf16.mxu0 %v505
  %633 = vmatpush1.bf16.msra.mxu0 %v504
  %634 = vmatprep.subr.bf16.mxu0 %v507
  %635 = vmatpush1.bf16.msra.mxu0 %v506
  %636 = vmatprep.subr.bf16.mxu0 %v509
  %637 = vmatpush1.bf16.msra.mxu0 %v508
  %638 = vmatprep.mubr.bf16.mxu0 %v207
  %639 = vmatmul.mubr.bf16.gmra.mrb[0].mxu0 %v206
  %v640 = vpop.f32.mrb[0].mxu0
  %v641 = vadd.f32 %v279, %v640
  %v642 = vpop.f32.mrb[0].mxu0
  %v643 = vadd.f32 %v283, %v642
  %v644 = vpop.f32.mrb[0].mxu0
  %v645 = vpop.f32.mrb[0].mxu0
  %646 = vdwg.mxu0
  %647 = vmatprep.subr.bf16.mxu0 %v511
  %648 = vmatpush1.bf16.msra.mxu0 %v510
  %649 = vmatprep.subr.bf16.mxu0 %v513
  %650 = vmatpush1.bf16.msra.mxu0 %v512
  %651 = vmatprep.subr.bf16.mxu0 %v515
  %652 = vmatpush1.bf16.msra.mxu0 %v514
  %653 = vmatprep.subr.bf16.mxu0 %v517
  %654 = vmatpush1.bf16.msra.mxu0 %v516
  %655 = vmatprep.subr.bf16.mxu0 %v519
  %656 = vmatpush1.bf16.msra.mxu0 %v518
  %657 = vmatprep.subr.bf16.mxu0 %v521
  %658 = vmatpush1.bf16.msra.mxu0 %v520
  %659 = vmatprep.subr.bf16.mxu0 %v523
  %660 = vmatpush1.bf16.msra.mxu0 %v522
  %661 = vmatprep.subr.bf16.mxu0 %v525
  %662 = vmatpush1.bf16.msra.mxu0 %v524
  %663 = vmatprep.subr.bf16.mxu0 %v527
  %664 = vmatpush1.bf16.msra.mxu0 %v526
  %665 = vmatprep.subr.bf16.mxu0 %v529
  %666 = vmatpush1.bf16.msra.mxu0 %v528
  %667 = vmatprep.subr.bf16.mxu0 %v531
  %668 = vmatpush1.bf16.msra.mxu0 %v530
  %669 = vmatprep.subr.bf16.mxu0 %v533
  %670 = vmatpush1.bf16.msra.mxu0 %v532
  %671 = vmatprep.subr.bf16.mxu0 %v535
  %672 = vmatpush1.bf16.msra.mxu0 %v534
  %673 = vmatprep.subr.bf16.mxu0 %v537
  %674 = vmatpush1.bf16.msra.mxu0 %v536
  %675 = vmatprep.subr.bf16.mxu0 %v539
  %676 = vmatpush1.bf16.msra.mxu0 %v538
  %677 = vmatprep.subr.bf16.mxu0 %v541
  %678 = vmatpush1.bf16.msra.mxu0 %v540
  %679 = vmatprep.mubr.bf16.mxu0 %v209
  %680 = vmatmul.mubr.bf16.gmra.mrb[0].mxu0 %v208
  %v681 = vpop.f32.mrb[0].mxu0
  %v682 = vadd.f32 %v641, %v681
  %v683 = vpop.f32.mrb[0].mxu0
  %v684 = vadd.f32 %v643, %v683
  %v685 = vpop.f32.mrb[0].mxu0
  %v686 = vpop.f32.mrb[0].mxu0
  %687 = vdwg.mxu0
  %v688 = vmax.f32 %v682, 0.0
  %v689 = vmax.f32 %v684, 0.0
  %v690 = vpack.c.bf16 %v688, %v688
  %v691 = vpack.c.bf16 %v689, %v689
  %v692 = vld [vmem:[%s6] sm:$0xf]
  %v693 = vld [vmem:[%s6 + $0x4] sm:$0xf]
  %v694 = vld [vmem:[%s6 + $0x8] sm:$0xf]
  %v695 = vld [vmem:[%s6 + $0xc] sm:$0xf]
  %v696 = vld [vmem:[%s6 + $0x10] sm:$0xf]
  %v697 = vld [vmem:[%s6 + $0x14] sm:$0xf]
  %v698 = vld [vmem:[%s6 + $0x18] sm:$0xf]
  %v699 = vld [vmem:[%s6 + $0x1c] sm:$0xf]
  %v700 = vld [vmem:[%s6 + $0x20] sm:$0xf]
  %v701 = vld [vmem:[%s6 + $0x24] sm:$0xf]
  %v702 = vld [vmem:[%s6 + $0x28] sm:$0xf]
  %v703 = vld [vmem:[%s6 + $0x2c] sm:$0xf]
  %v704 = vld [vmem:[%s6 + $0x30] sm:$0xf]
  %v705 = vld [vmem:[%s6 + $0x34] sm:$0xf]
  %v706 = vld [vmem:[%s6 + $0x38] sm:$0xf]
  %v707 = vld [vmem:[%s6 + $0x3c] sm:$0xf]
  %v708 = vld [vmem:[%s6 + $0x40] sm:$0xf]
  %v709 = vld [vmem:[%s6 + $0x44] sm:$0xf]
  %v710 = vld [vmem:[%s6 + $0x48] sm:$0xf]
  %v711 = vld [vmem:[%s6 + $0x4c] sm:$0xf]
  %v712 = vld [vmem:[%s6 + $0x50] sm:$0xf]
  %v713 = vld [vmem:[%s6 + $0x54] sm:$0xf]
  %v714 = vld [vmem:[%s6 + $0x58] sm:$0xf]
  %v715 = vld [vmem:[%s6 + $0x5c] sm:$0xf]
  %v716 = vld [vmem:[%s6 + $0x60] sm:$0xf]
  %v717 = vld [vmem:[%s6 + $0x64] sm:$0xf]
  %v718 = vld [vmem:[%s6 + $0x68] sm:$0xf]
  %v719 = vld [vmem:[%s6 + $0x6c] sm:$0xf]
  %v720 = vld [vmem:[%s6 + $0x70] sm:$0xf]
  %v721 = vld [vmem:[%s6 + $0x74] sm:$0xf]
  %v722 = vld [vmem:[%s6 + $0x78] sm:$0xf]
  %v723 = vld [vmem:[%s6 + $0x7c] sm:$0xf]
  %v724 = vld [vmem:[%s7] sm:$0x1]
  %v726 = vlaneseq
  %v727 = vshrl.u32 %v726, 7
  %v728 = vsub.s32 0, %v727
  %v729 = vrot.slane %v724, %v728
  %v763 = vunpack.c.l.b16 %v692
  %v764 = vunpack.c.l.b16 %v693
  %v765 = vunpack.c.l.b16 %v694
  %v766 = vunpack.c.l.b16 %v695
  %v767 = vunpack.c.l.b16 %v696
  %v768 = vunpack.c.l.b16 %v697
  %v769 = vunpack.c.l.b16 %v698
  %v770 = vunpack.c.l.b16 %v699
  %v771 = vunpack.c.l.b16 %v700
  %v772 = vunpack.c.l.b16 %v701
  %v773 = vunpack.c.l.b16 %v702
  %v774 = vunpack.c.l.b16 %v703
  %v775 = vunpack.c.l.b16 %v704
  %v776 = vunpack.c.l.b16 %v705
  %v777 = vunpack.c.l.b16 %v706
  %v778 = vunpack.c.l.b16 %v707
  %v779 = vunpack.c.l.b16 %v708
  %v780 = vunpack.c.l.b16 %v709
  %v781 = vunpack.c.l.b16 %v710
  %v782 = vunpack.c.l.b16 %v711
  %v783 = vunpack.c.l.b16 %v712
  %v784 = vunpack.c.l.b16 %v713
  %v785 = vunpack.c.l.b16 %v714
  %v786 = vunpack.c.l.b16 %v715
  %v787 = vunpack.c.l.b16 %v716
  %v788 = vunpack.c.l.b16 %v717
  %v789 = vunpack.c.l.b16 %v718
  %v790 = vunpack.c.l.b16 %v719
  %v791 = vunpack.c.l.b16 %v720
  %v792 = vunpack.c.l.b16 %v721
  %v793 = vunpack.c.l.b16 %v722
  %v794 = vunpack.c.l.b16 %v723
  %v795 = vpack.c.b16 %v764, %v763
  %v796 = vpack.c.b16 %v766, %v765
  %v797 = vpack.c.b16 %v768, %v767
  %v798 = vpack.c.b16 %v770, %v769
  %v799 = vpack.c.b16 %v772, %v771
  %v800 = vpack.c.b16 %v774, %v773
  %v801 = vpack.c.b16 %v776, %v775
  %v802 = vpack.c.b16 %v778, %v777
  %v803 = vpack.c.b16 %v780, %v779
  %v804 = vpack.c.b16 %v782, %v781
  %v805 = vpack.c.b16 %v784, %v783
  %v806 = vpack.c.b16 %v786, %v785
  %v807 = vpack.c.b16 %v788, %v787
  %v808 = vpack.c.b16 %v790, %v789
  %v809 = vpack.c.b16 %v792, %v791
  %v810 = vpack.c.b16 %v794, %v793
  %827 = vmatprep.subr.bf16.mxu0 0
  %828 = vmatpush1.bf16.msra.mxu0 %v795
  %829 = vmatprep.subr.bf16.mxu0 0
  %830 = vmatpush1.bf16.msra.mxu0 %v796
  %831 = vmatprep.subr.bf16.mxu0 0
  %832 = vmatpush1.bf16.msra.mxu0 %v797
  %833 = vmatprep.subr.bf16.mxu0 0
  %834 = vmatpush1.bf16.msra.mxu0 %v798
  %835 = vmatprep.subr.bf16.mxu0 0
  %836 = vmatpush1.bf16.msra.mxu0 %v799
  %837 = vmatprep.subr.bf16.mxu0 0
  %838 = vmatpush1.bf16.msra.mxu0 %v800
  %839 = vmatprep.subr.bf16.mxu0 0
  %840 = vmatpush1.bf16.msra.mxu0 %v801
  %841 = vmatprep.subr.bf16.mxu0 0
  %842 = vmatpush1.bf16.msra.mxu0 %v802
  %843 = vmatprep.subr.bf16.mxu0 0
  %844 = vmatpush1.bf16.msra.mxu0 %v803
  %845 = vmatprep.subr.bf16.mxu0 0
  %846 = vmatpush1.bf16.msra.mxu0 %v804
  %847 = vmatprep.subr.bf16.mxu0 0
  %848 = vmatpush1.bf16.msra.mxu0 %v805
  %849 = vmatprep.subr.bf16.mxu0 0
  %850 = vmatpush1.bf16.msra.mxu0 %v806
  %851 = vmatprep.subr.bf16.mxu0 0
  %852 = vmatpush1.bf16.msra.mxu0 %v807
  %853 = vmatprep.subr.bf16.mxu0 0
  %854 = vmatpush1.bf16.msra.mxu0 %v808
  %855 = vmatprep.subr.bf16.mxu0 0
  %856 = vmatpush1.bf16.msra.mxu0 %v809
  %857 = vmatprep.subr.bf16.mxu0 0
  %858 = vmatpush1.bf16.msra.mxu0 %v810
  %859 = vmatprep.mubr.bf16.mxu0 %v691
  %860 = vmatmul.mubr.bf16.gmra.mrb[0].mxu0 %v690
  %v861 = vpop.f32.mrb[0].mxu0
  %v862 = vadd.f32 %v729, %v861
  %v863 = vpop.f32.mrb[0].mxu0
  %v864 = vpop.f32.mrb[0].mxu0
  %v865 = vpop.f32.mrb[0].mxu0
  %866 = vdwg.mxu0
  %v867 = vmax.f32 %v862, 0.0
  %v868 = vld [vmem:[%s8] sm:$0xff]
  %v869 = vld [vmem:[%s8 + $0x8] sm:$0xff]
  %v870 = vld [vmem:[%s8 + $0x10] sm:$0xff]
  %v871 = vld [vmem:[%s8 + $0x18] sm:$0xff]
  %v872 = vld [vmem:[%s8 + $0x20] sm:$0xff]
  %v873 = vld [vmem:[%s8 + $0x28] sm:$0xff]
  %v874 = vld [vmem:[%s8 + $0x30] sm:$0xff]
  %v875 = vld [vmem:[%s8 + $0x38] sm:$0xff]
  %v876 = vld [vmem:[%s8 + $0x40] sm:$0xff]
  %v877 = vld [vmem:[%s8 + $0x48] sm:$0xff]
  %v878 = vld [vmem:[%s8 + $0x50] sm:$0xff]
  %v879 = vld [vmem:[%s8 + $0x58] sm:$0xff]
  %v880 = vld [vmem:[%s8 + $0x60] sm:$0xff]
  %v881 = vld [vmem:[%s8 + $0x68] sm:$0xff]
  %v882 = vld [vmem:[%s8 + $0x70] sm:$0xff]
  %v883 = vld [vmem:[%s8 + $0x78] sm:$0xff]
  %v884 = vld [vmem:[%s9] sm:$0x1]
  %v886 = vlaneseq
  %v887 = vshrl.u32 %v886, 7
  %v888 = vsub.s32 0, %v887
  %v889 = vrot.slane %v884, %v888
  %891 = vmatprep.subr.mxu0 0.0
  %892 = vmatpush1.msra.mxu0 %v868
  %893 = vmatprep.subr.mxu0 0.0
  %894 = vmatpush1.msra.mxu0 %v869
  %895 = vmatprep.subr.mxu0 0.0
  %896 = vmatpush1.msra.mxu0 %v870
  %897 = vmatprep.subr.mxu0 0.0
  %898 = vmatpush1.msra.mxu0 %v871
  %899 = vmatprep.subr.mxu0 0.0
  %900 = vmatpush1.msra.mxu0 %v872
  %901 = vmatprep.subr.mxu0 0.0
  %902 = vmatpush1.msra.mxu0 %v873
  %903 = vmatprep.subr.mxu0 0.0
  %904 = vmatpush1.msra.mxu0 %v874
  %905 = vmatprep.subr.mxu0 0.0
  %906 = vmatpush1.msra.mxu0 %v875
  %907 = vmatprep.subr.mxu0 0.0
  %908 = vmatpush1.msra.mxu0 %v876
  %909 = vmatprep.subr.mxu0 0.0
  %910 = vmatpush1.msra.mxu0 %v877
  %911 = vmatprep.subr.mxu0 0.0
  %912 = vmatpush1.msra.mxu0 %v878
  %913 = vmatprep.subr.mxu0 0.0
  %914 = vmatpush1.msra.mxu0 %v879
  %915 = vmatprep.subr.mxu0 0.0
  %916 = vmatpush1.msra.mxu0 %v880
  %917 = vmatprep.subr.mxu0 0.0
  %918 = vmatpush1.msra.mxu0 %v881
  %919 = vmatprep.subr.mxu0 0.0
  %920 = vmatpush1.msra.mxu0 %v882
  %921 = vmatprep.subr.mxu0 0.0
  %922 = vmatpush1.msra.mxu0 %v883
  %923 = vmatprep.subr.mxu0 0.0
  %924 = vmatpush1.msra.mxu0 0.0
  %925 = vmatprep.subr.mxu0 0.0
  %926 = vmatpush1.msra.mxu0 0.0
  %927 = vmatprep.subr.mxu0 0.0
  %928 = vmatpush1.msra.mxu0 0.0
  %929 = vmatprep.subr.mxu0 0.0
  %930 = vmatpush1.msra.mxu0 0.0
  %931 = vmatprep.subr.mxu0 0.0
  %932 = vmatpush1.msra.mxu0 0.0
  %933 = vmatprep.subr.mxu0 0.0
  %934 = vmatpush1.msra.mxu0 0.0
  %935 = vmatprep.subr.mxu0 0.0
  %936 = vmatpush1.msra.mxu0 0.0
  %937 = vmatprep.subr.mxu0 0.0
  %938 = vmatpush1.msra.mxu0 0.0
  %939 = vmatprep.subr.mxu0 0.0
  %940 = vmatpush1.msra.mxu0 0.0
  %941 = vmatprep.subr.mxu0 0.0
  %942 = vmatpush1.msra.mxu0 0.0
  %943 = vmatprep.subr.mxu0 0.0
  %944 = vmatpush1.msra.mxu0 0.0
  %945 = vmatprep.subr.mxu0 0.0
  %946 = vmatpush1.msra.mxu0 0.0
  %947 = vmatprep.subr.mxu0 0.0
  %948 = vmatpush1.msra.mxu0 0.0
  %949 = vmatprep.subr.mxu0 0.0
  %950 = vmatpush1.msra.mxu0 0.0
  %951 = vmatprep.subr.mxu0 0.0
  %952 = vmatpush1.msra.mxu0 0.0
  %953 = vmatprep.subr.mxu0 0.0
  %954 = vmatpush1.msra.mxu0 0.0
  %955 = vmatprep.mubr.f32.mxu0 0.0
  %956 = vmatmul.mubr.f32.gmra.mrb[0].mxu0 %v867
  %v957 = vpop.f32.mrb[0].mxu0
  %v958 = vadd.f32 %v889, %v957
  %v959 = vpop.f32.mrb[0].mxu0
  %960 = vdwg.mxu0
  %v961 = vld [vmem:[%s1] sm:$0xff]
  %v962 = vmul.f32 %v958, 0.5
  %v963 = vmul.f32 %v962, 1.442695
  %v964 = vpow.pop %v963
  %966 = vrot.lane.b32.xlu0 %v964, 116
  %v967 = vpop.permute.xlu0 %966
  %v969 = vmul.f32 %v961, %v967
  %v970 = vadd.f32 %v958, %v969
  %v971 = vpack.c.bf16 %v970, %v970
  %v972 = vld [vmem:[%s10] sm:$0xf]
  %v973 = vld [vmem:[%s10 + $0x4] sm:$0x3]
  %v974 = vld [vmem:[%s11] sm:$0x1]
  %v976 = vlaneseq
  %v977 = vshrl.u32 %v976, 7
  %v978 = vsub.s32 0, %v977
  %v979 = vrot.slane %v974, %v978
  %v983 = vunpack.c.l.b16 %v972
  %v984 = vunpack.c.l.b16 %v973
  %v985 = vpack.c.b16 %v984, %v983
  %vm986 = vcmask 97280
  %v988 = vsel %vm986, %v971, 0
  %vm990 = vcmask 1045504
  %v992 = vsel %vm990, %v985, 0
  %994 = vmatprep.subr.bf16.mxu0 0
  %995 = vmatpush1.bf16.msra.mxu0 %v992
  %996 = vmatprep.subr.bf16.mxu0 0
  %997 = vmatpush1.bf16.msra.mxu0 0
  %998 = vmatprep.subr.bf16.mxu0 0
  %999 = vmatpush1.bf16.msra.mxu0 0
  %1000 = vmatprep.subr.bf16.mxu0 0
  %1001 = vmatpush1.bf16.msra.mxu0 0
  %1002 = vmatprep.subr.bf16.mxu0 0
  %1003 = vmatpush1.bf16.msra.mxu0 0
  %1004 = vmatprep.subr.bf16.mxu0 0
  %1005 = vmatpush1.bf16.msra.mxu0 0
  %1006 = vmatprep.subr.bf16.mxu0 0
  %1007 = vmatpush1.bf16.msra.mxu0 0
  %1008 = vmatprep.subr.bf16.mxu0 0
  %1009 = vmatpush1.bf16.msra.mxu0 0
  %1010 = vmatprep.subr.bf16.mxu0 0
  %1011 = vmatpush1.bf16.msra.mxu0 0
  %1012 = vmatprep.subr.bf16.mxu0 0
  %1013 = vmatpush1.bf16.msra.mxu0 0
  %1014 = vmatprep.subr.bf16.mxu0 0
  %1015 = vmatpush1.bf16.msra.mxu0 0
  %1016 = vmatprep.subr.bf16.mxu0 0
  %1017 = vmatpush1.bf16.msra.mxu0 0
  %1018 = vmatprep.subr.bf16.mxu0 0
  %1019 = vmatpush1.bf16.msra.mxu0 0
  %1020 = vmatprep.subr.bf16.mxu0 0
  %1021 = vmatpush1.bf16.msra.mxu0 0
  %1022 = vmatprep.subr.bf16.mxu0 0
  %1023 = vmatpush1.bf16.msra.mxu0 0
  %1024 = vmatprep.subr.bf16.mxu0 0
  %1025 = vmatpush1.bf16.msra.mxu0 0
  %1026 = vmatprep.mubr.bf16.mxu0 0
  %1027 = vmatmul.mubr.bf16.gmra.mrb[0].mxu0 %v988
  %v1028 = vpop.f32.mrb[0].mxu0
  %v1029 = vadd.f32 %v979, %v1028
  %v1030 = vpop.f32.mrb[0].mxu0
  %v1031 = vpop.f32.mrb[0].mxu0
  %v1032 = vpop.f32.mrb[0].mxu0
  %1033 = vdwg.mxu0
  %v1034 = vmax.f32 %v1029, 0.0
  %v1035 = vpack.c.bf16 %v1034, %v1034
  %v1036 = vld [vmem:[%s12] sm:$0xff]
  %v1037 = vld [vmem:[%s12 + $0x8] sm:$0xff]
  %v1038 = vld [vmem:[%s12 + $0x10] sm:$0xff]
  %v1039 = vld [vmem:[%s12 + $0x18] sm:$0xff]
  %v1040 = vld [vmem:[%s12 + $0x20] sm:$0xff]
  %v1041 = vld [vmem:[%s12 + $0x28] sm:$0xff]
  %v1042 = vld [vmem:[%s12 + $0x30] sm:$0xff]
  %v1043 = vld [vmem:[%s12 + $0x38] sm:$0xff]
  %v1044 = vld [vmem:[%s12 + $0x40] sm:$0xff]
  %v1045 = vld [vmem:[%s12 + $0x48] sm:$0xff]
  %v1046 = vld [vmem:[%s12 + $0x50] sm:$0xff]
  %v1047 = vld [vmem:[%s12 + $0x58] sm:$0xff]
  %v1048 = vld [vmem:[%s12 + $0x60] sm:$0xff]
  %v1049 = vld [vmem:[%s12 + $0x68] sm:$0xff]
  %v1050 = vld [vmem:[%s12 + $0x70] sm:$0xff]
  %v1051 = vld [vmem:[%s12 + $0x78] sm:$0xff]
  %v1052 = vld [vmem:[%s13] sm:$0x3]
  %v1054 = vlaneseq
  %v1055 = vshrl.u32 %v1054, 7
  %v1056 = vsub.s32 0, %v1055
  %v1057 = vrot.slane %v1052, %v1056
  %v1058 = vlaneseq
  %v1059 = vshrl.u32 %v1058, 7
  %v1060 = vsub.s32 1, %v1059
  %v1061 = vrot.slane %v1052, %v1060
  %v1080 = vunpack.c.l.b16 %v1036
  %v1081 = vunpack.c.h.b16 %v1036
  %v1082 = vunpack.c.l.b16 %v1037
  %v1083 = vunpack.c.h.b16 %v1037
  %v1084 = vunpack.c.l.b16 %v1038
  %v1085 = vunpack.c.h.b16 %v1038
  %v1086 = vunpack.c.l.b16 %v1039
  %v1087 = vunpack.c.h.b16 %v1039
  %v1088 = vunpack.c.l.b16 %v1040
  %v1089 = vunpack.c.h.b16 %v1040
  %v1090 = vunpack.c.l.b16 %v1041
  %v1091 = vunpack.c.h.b16 %v1041
  %v1092 = vunpack.c.l.b16 %v1042
  %v1093 = vunpack.c.h.b16 %v1042
  %v1094 = vunpack.c.l.b16 %v1043
  %v1095 = vunpack.c.h.b16 %v1043
  %v1096 = vunpack.c.l.b16 %v1044
  %v1097 = vunpack.c.h.b16 %v1044
  %v1098 = vunpack.c.l.b16 %v1045
  %v1099 = vunpack.c.h.b16 %v1045
  %v1100 = vunpack.c.l.b16 %v1046
  %v1101 = vunpack.c.h.b16 %v1046
  %v1102 = vunpack.c.l.b16 %v1047
  %v1103 = vunpack.c.h.b16 %v1047
  %v1104 = vunpack.c.l.b16 %v1048
  %v1105 = vunpack.c.h.b16 %v1048
  %v1106 = vunpack.c.l.b16 %v1049
  %v1107 = vunpack.c.h.b16 %v1049
  %v1108 = vunpack.c.l.b16 %v1050
  %v1109 = vunpack.c.h.b16 %v1050
  %v1110 = vunpack.c.l.b16 %v1051
  %v1111 = vunpack.c.h.b16 %v1051
  %v1112 = vpack.c.b16 %v1082, %v1080
  %v1113 = vpack.c.b16 %v1083, %v1081
  %v1114 = vpack.c.b16 %v1086, %v1084
  %v1115 = vpack.c.b16 %v1087, %v1085
  %v1116 = vpack.c.b16 %v1090, %v1088
  %v1117 = vpack.c.b16 %v1091, %v1089
  %v1118 = vpack.c.b16 %v1094, %v1092
  %v1119 = vpack.c.b16 %v1095, %v1093
  %v1120 = vpack.c.b16 %v1098, %v1096
  %v1121 = vpack.c.b16 %v1099, %v1097
  %v1122 = vpack.c.b16 %v1102, %v1100
  %v1123 = vpack.c.b16 %v1103, %v1101
  %v1124 = vpack.c.b16 %v1106, %v1104
  %v1125 = vpack.c.b16 %v1107, %v1105
  %v1126 = vpack.c.b16 %v1110, %v1108
  %v1127 = vpack.c.b16 %v1111, %v1109
  %1144 = vmatprep.subr.bf16.mxu0 %v1113
  %1145 = vmatpush1.bf16.msra.mxu0 %v1112
  %1146 = vmatprep.subr.bf16.mxu0 %v1115
  %1147 = vmatpush1.bf16.msra.mxu0 %v1114
  %1148 = vmatprep.subr.bf16.mxu0 %v1117
  %1149 = vmatpush1.bf16.msra.mxu0 %v1116
  %1150 = vmatprep.subr.bf16.mxu0 %v1119
  %1151 = vmatpush1.bf16.msra.mxu0 %v1118
  %1152 = vmatprep.subr.bf16.mxu0 %v1121
  %1153 = vmatpush1.bf16.msra.mxu0 %v1120
  %1154 = vmatprep.subr.bf16.mxu0 %v1123
  %1155 = vmatpush1.bf16.msra.mxu0 %v1122
  %1156 = vmatprep.subr.bf16.mxu0 %v1125
  %1157 = vmatpush1.bf16.msra.mxu0 %v1124
  %1158 = vmatprep.subr.bf16.mxu0 %v1127
  %1159 = vmatpush1.bf16.msra.mxu0 %v1126
  %1160 = vmatprep.subr.bf16.mxu0 0
  %1161 = vmatpush1.bf16.msra.mxu0 0
  %1162 = vmatprep.subr.bf16.mxu0 0
  %1163 = vmatpush1.bf16.msra.mxu0 0
  %1164 = vmatprep.subr.bf16.mxu0 0
  %1165 = vmatpush1.bf16.msra.mxu0 0
  %1166 = vmatprep.subr.bf16.mxu0 0
  %1167 = vmatpush1.bf16.msra.mxu0 0
  %1168 = vmatprep.subr.bf16.mxu0 0
  %1169 = vmatpush1.bf16.msra.mxu0 0
  %1170 = vmatprep.subr.bf16.mxu0 0
  %1171 = vmatpush1.bf16.msra.mxu0 0
  %1172 = vmatprep.subr.bf16.mxu0 0
  %1173 = vmatpush1.bf16.msra.mxu0 0
  %1174 = vmatprep.subr.bf16.mxu0 0
  %1175 = vmatpush1.bf16.msra.mxu0 0
  %1176 = vmatprep.mubr.bf16.mxu0 0
  %1177 = vmatmul.mubr.bf16.gmra.mrb[0].mxu0 %v1035
  %v1178 = vpop.f32.mrb[0].mxu0
  %v1179 = vadd.f32 %v1057, %v1178
  %v1180 = vpop.f32.mrb[0].mxu0
  %v1181 = vadd.f32 %v1061, %v1180
  %v1182 = vpop.f32.mrb[0].mxu0
  %v1183 = vpop.f32.mrb[0].mxu0
  %1184 = vdwg.mxu0
  %v1185 = vmax.f32 %v1179, 0.0
  %v1186 = vmax.f32 %v1181, 0.0
  %v1187 = vpack.c.bf16 %v1185, %v1185
  %v1188 = vpack.c.bf16 %v1186, %v1186
  %v1189 = vld [vmem:[%s14] sm:$0xff]
  %v1190 = vld [vmem:[%s14 + $0x8] sm:$0xff]
  %v1191 = vld [vmem:[%s14 + $0x10] sm:$0xff]
  %v1192 = vld [vmem:[%s14 + $0x18] sm:$0xff]
  %v1193 = vld [vmem:[%s14 + $0x20] sm:$0xff]
  %v1194 = vld [vmem:[%s14 + $0x28] sm:$0xff]
  %v1195 = vld [vmem:[%s14 + $0x30] sm:$0xff]
  %v1196 = vld [vmem:[%s14 + $0x38] sm:$0xff]
  %v1197 = vld [vmem:[%s14 + $0x40] sm:$0xff]
  %v1198 = vld [vmem:[%s14 + $0x48] sm:$0xff]
  %v1199 = vld [vmem:[%s14 + $0x50] sm:$0xff]
  %v1200 = vld [vmem:[%s14 + $0x58] sm:$0xff]
  %v1201 = vld [vmem:[%s14 + $0x60] sm:$0xff]
  %v1202 = vld [vmem:[%s14 + $0x68] sm:$0xff]
  %v1203 = vld [vmem:[%s14 + $0x70] sm:$0xff]
  %v1204 = vld [vmem:[%s14 + $0x78] sm:$0xff]
  %v1205 = vld [vmem:[%s14 + $0x80] sm:$0xff]
  %v1206 = vld [vmem:[%s14 + $0x88] sm:$0xff]
  %v1207 = vld [vmem:[%s14 + $0x90] sm:$0xff]
  %v1208 = vld [vmem:[%s14 + $0x98] sm:$0xff]
  %v1209 = vld [vmem:[%s14 + $0xa0] sm:$0xff]
  %v1210 = vld [vmem:[%s14 + $0xa8] sm:$0xff]
  %v1211 = vld [vmem:[%s14 + $0xb0] sm:$0xff]
  %v1212 = vld [vmem:[%s14 + $0xb8] sm:$0xff]
  %v1213 = vld [vmem:[%s14 + $0xc0] sm:$0xff]
  %v1214 = vld [vmem:[%s14 + $0xc8] sm:$0xff]
  %v1215 = vld [vmem:[%s14 + $0xd0] sm:$0xff]
  %v1216 = vld [vmem:[%s14 + $0xd8] sm:$0xff]
  %v1217 = vld [vmem:[%s14 + $0xe0] sm:$0xff]
  %v1218 = vld [vmem:[%s14 + $0xe8] sm:$0xff]
  %v1219 = vld [vmem:[%s14 + $0xf0] sm:$0xff]
  %v1220 = vld [vmem:[%s14 + $0xf8] sm:$0xff]
  %v1221 = vld [vmem:[%s14 + $0x100] sm:$0xff]
  %v1222 = vld [vmem:[%s14 + $0x108] sm:$0xff]
  %v1223 = vld [vmem:[%s14 + $0x110] sm:$0xff]
  %v1224 = vld [vmem:[%s14 + $0x118] sm:$0xff]
  %v1225 = vld [vmem:[%s14 + $0x120] sm:$0xff]
  %v1226 = vld [vmem:[%s14 + $0x128] sm:$0xff]
  %v1227 = vld [vmem:[%s14 + $0x130] sm:$0xff]
  %v1228 = vld [vmem:[%s14 + $0x138] sm:$0xff]
  %v1229 = vld [vmem:[%s14 + $0x140] sm:$0xff]
  %v1230 = vld [vmem:[%s14 + $0x148] sm:$0xff]
  %v1231 = vld [vmem:[%s14 + $0x150] sm:$0xff]
  %v1232 = vld [vmem:[%s14 + $0x158] sm:$0xff]
  %v1233 = vld [vmem:[%s14 + $0x160] sm:$0xff]
  %v1234 = vld [vmem:[%s14 + $0x168] sm:$0xff]
  %v1235 = vld [vmem:[%s14 + $0x170] sm:$0xff]
  %v1236 = vld [vmem:[%s14 + $0x178] sm:$0xff]
  %v1237 = vld [vmem:[%s14 + $0x180] sm:$0xff]
  %v1238 = vld [vmem:[%s14 + $0x188] sm:$0xff]
  %v1239 = vld [vmem:[%s14 + $0x190] sm:$0xff]
  %v1240 = vld [vmem:[%s14 + $0x198] sm:$0xff]
  %v1241 = vld [vmem:[%s14 + $0x1a0] sm:$0xff]
  %v1242 = vld [vmem:[%s14 + $0x1a8] sm:$0xff]
  %v1243 = vld [vmem:[%s14 + $0x1b0] sm:$0xff]
  %v1244 = vld [vmem:[%s14 + $0x1b8] sm:$0xff]
  %v1245 = vld [vmem:[%s14 + $0x1c0] sm:$0xff]
  %v1246 = vld [vmem:[%s14 + $0x1c8] sm:$0xff]
  %v1247 = vld [vmem:[%s14 + $0x1d0] sm:$0xff]
  %v1248 = vld [vmem:[%s14 + $0x1d8] sm:$0xff]
  %v1249 = vld [vmem:[%s14 + $0x1e0] sm:$0xff]
  %v1250 = vld [vmem:[%s14 + $0x1e8] sm:$0xff]
  %v1251 = vld [vmem:[%s14 + $0x1f0] sm:$0xff]
  %v1252 = vld [vmem:[%s14 + $0x1f8] sm:$0xff]
  %v1253 = vld [vmem:[%s15] sm:$0xf]
  %v1255 = vlaneseq
  %v1256 = vshrl.u32 %v1255, 7
  %v1257 = vsub.s32 0, %v1256
  %v1258 = vrot.slane %v1253, %v1257
  %v1259 = vlaneseq
  %v1260 = vshrl.u32 %v1259, 7
  %v1261 = vsub.s32 1, %v1260
  %v1262 = vrot.slane %v1253, %v1261
  %v1263 = vlaneseq
  %v1264 = vshrl.u32 %v1263, 7
  %v1265 = vsub.s32 2, %v1264
  %v1266 = vrot.slane %v1253, %v1265
  %v1267 = vlaneseq
  %v1268 = vshrl.u32 %v1267, 7
  %v1269 = vsub.s32 3, %v1268
  %v1270 = vrot.slane %v1253, %v1269
  %v1339 = vunpack.c.l.b16 %v1189
  %v1340 = vunpack.c.h.b16 %v1189
  %v1341 = vunpack.c.l.b16 %v1190
  %v1342 = vunpack.c.h.b16 %v1190
  %v1343 = vunpack.c.l.b16 %v1191
  %v1344 = vunpack.c.h.b16 %v1191
  %v1345 = vunpack.c.l.b16 %v1192
  %v1346 = vunpack.c.h.b16 %v1192
  %v1347 = vunpack.c.l.b16 %v1193
  %v1348 = vunpack.c.h.b16 %v1193
  %v1349 = vunpack.c.l.b16 %v1194
  %v1350 = vunpack.c.h.b16 %v1194
  %v1351 = vunpack.c.l.b16 %v1195
  %v1352 = vunpack.c.h.b16 %v1195
  %v1353 = vunpack.c.l.b16 %v1196
  %v1354 = vunpack.c.h.b16 %v1196
  %v1355 = vunpack.c.l.b16 %v1197
  %v1356 = vunpack.c.h.b16 %v1197
  %v1357 = vunpack.c.l.b16 %v1198
  %v1358 = vunpack.c.h.b16 %v1198
  %v1359 = vunpack.c.l.b16 %v1199
  %v1360 = vunpack.c.h.b16 %v1199
  %v1361 = vunpack.c.l.b16 %v1200
  %v1362 = vunpack.c.h.b16 %v1200
  %v1363 = vunpack.c.l.b16 %v1201
  %v1364 = vunpack.c.h.b16 %v1201
  %v1365 = vunpack.c.l.b16 %v1202
  %v1366 = vunpack.c.h.b16 %v1202
  %v1367 = vunpack.c.l.b16 %v1203
  %v1368 = vunpack.c.h.b16 %v1203
  %v1369 = vunpack.c.l.b16 %v1204
  %v1370 = vunpack.c.h.b16 %v1204
  %v1371 = vunpack.c.l.b16 %v1205
  %v1372 = vunpack.c.h.b16 %v1205
  %v1373 = vunpack.c.l.b16 %v1206
  %v1374 = vunpack.c.h.b16 %v1206
  %v1375 = vunpack.c.l.b16 %v1207
  %v1376 = vunpack.c.h.b16 %v1207
  %v1377 = vunpack.c.l.b16 %v1208
  %v1378 = vunpack.c.h.b16 %v1208
  %v1379 = vunpack.c.l.b16 %v1209
  %v1380 = vunpack.c.h.b16 %v1209
  %v1381 = vunpack.c.l.b16 %v1210
  %v1382 = vunpack.c.h.b16 %v1210
  %v1383 = vunpack.c.l.b16 %v1211
  %v1384 = vunpack.c.h.b16 %v1211
  %v1385 = vunpack.c.l.b16 %v1212
  %v1386 = vunpack.c.h.b16 %v1212
  %v1387 = vunpack.c.l.b16 %v1213
  %v1388 = vunpack.c.h.b16 %v1213
  %v1389 = vunpack.c.l.b16 %v1214
  %v1390 = vunpack.c.h.b16 %v1214
  %v1391 = vunpack.c.l.b16 %v1215
  %v1392 = vunpack.c.h.b16 %v1215
  %v1393 = vunpack.c.l.b16 %v1216
  %v1394 = vunpack.c.h.b16 %v1216
  %v1395 = vunpack.c.l.b16 %v1217
  %v1396 = vunpack.c.h.b16 %v1217
  %v1397 = vunpack.c.l.b16 %v1218
  %v1398 = vunpack.c.h.b16 %v1218
  %v1399 = vunpack.c.l.b16 %v1219
  %v1400 = vunpack.c.h.b16 %v1219
  %v1401 = vunpack.c.l.b16 %v1220
  %v1402 = vunpack.c.h.b16 %v1220
  %v1403 = vunpack.c.l.b16 %v1221
  %v1404 = vunpack.c.h.b16 %v1221
  %v1405 = vunpack.c.l.b16 %v1222
  %v1406 = vunpack.c.h.b16 %v1222
  %v1407 = vunpack.c.l.b16 %v1223
  %v1408 = vunpack.c.h.b16 %v1223
  %v1409 = vunpack.c.l.b16 %v1224
  %v1410 = vunpack.c.h.b16 %v1224
  %v1411 = vunpack.c.l.b16 %v1225
  %v1412 = vunpack.c.h.b16 %v1225
  %v1413 = vunpack.c.l.b16 %v1226
  %v1414 = vunpack.c.h.b16 %v1226
  %v1415 = vunpack.c.l.b16 %v1227
  %v1416 = vunpack.c.h.b16 %v1227
  %v1417 = vunpack.c.l.b16 %v1228
  %v1418 = vunpack.c.h.b16 %v1228
  %v1419 = vunpack.c.l.b16 %v1229
  %v1420 = vunpack.c.h.b16 %v1229
  %v1421 = vunpack.c.l.b16 %v1230
  %v1422 = vunpack.c.h.b16 %v1230
  %v1423 = vunpack.c.l.b16 %v1231
  %v1424 = vunpack.c.h.b16 %v1231
  %v1425 = vunpack.c.l.b16 %v1232
  %v1426 = vunpack.c.h.b16 %v1232
  %v1427 = vunpack.c.l.b16 %v1233
  %v1428 = vunpack.c.h.b16 %v1233
  %v1429 = vunpack.c.l.b16 %v1234
  %v1430 = vunpack.c.h.b16 %v1234
  %v1431 = vunpack.c.l.b16 %v1235
  %v1432 = vunpack.c.h.b16 %v1235
  %v1433 = vunpack.c.l.b16 %v1236
  %v1434 = vunpack.c.h.b16 %v1236
  %v1435 = vunpack.c.l.b16 %v1237
  %v1436 = vunpack.c.h.b16 %v1237
  %v1437 = vunpack.c.l.b16 %v1238
  %v1438 = vunpack.c.h.b16 %v1238
  %v1439 = vunpack.c.l.b16 %v1239
  %v1440 = vunpack.c.h.b16 %v1239
  %v1441 = vunpack.c.l.b16 %v1240
  %v1442 = vunpack.c.h.b16 %v1240
  %v1443 = vunpack.c.l.b16 %v1241
  %v1444 = vunpack.c.h.b16 %v1241
  %v1445 = vunpack.c.l.b16 %v1242
  %v1446 = vunpack.c.h.b16 %v1242
  %v1447 = vunpack.c.l.b16 %v1243
  %v1448 = vunpack.c.h.b16 %v1243
  %v1449 = vunpack.c.l.b16 %v1244
  %v1450 = vunpack.c.h.b16 %v1244
  %v1451 = vunpack.c.l.b16 %v1245
  %v1452 = vunpack.c.h.b16 %v1245
  %v1453 = vunpack.c.l.b16 %v1246
  %v1454 = vunpack.c.h.b16 %v1246
  %v1455 = vunpack.c.l.b16 %v1247
  %v1456 = vunpack.c.h.b16 %v1247
  %v1457 = vunpack.c.l.b16 %v1248
  %v1458 = vunpack.c.h.b16 %v1248
  %v1459 = vunpack.c.l.b16 %v1249
  %v1460 = vunpack.c.h.b16 %v1249
  %v1461 = vunpack.c.l.b16 %v1250
  %v1462 = vunpack.c.h.b16 %v1250
  %v1463 = vunpack.c.l.b16 %v1251
  %v1464 = vunpack.c.h.b16 %v1251
  %v1465 = vunpack.c.l.b16 %v1252
  %v1466 = vunpack.c.h.b16 %v1252
  %v1467 = vpack.c.b16 %v1343, %v1339
  %v1468 = vpack.c.b16 %v1344, %v1340
  %v1469 = vpack.c.b16 %v1345, %v1341
  %v1470 = vpack.c.b16 %v1346, %v1342
  %v1471 = vpack.c.b16 %v1351, %v1347
  %v1472 = vpack.c.b16 %v1352, %v1348
  %v1473 = vpack.c.b16 %v1353, %v1349
  %v1474 = vpack.c.b16 %v1354, %v1350
  %v1475 = vpack.c.b16 %v1359, %v1355
  %v1476 = vpack.c.b16 %v1360, %v1356
  %v1477 = vpack.c.b16 %v1361, %v1357
  %v1478 = vpack.c.b16 %v1362, %v1358
  %v1479 = vpack.c.b16 %v1367, %v1363
  %v1480 = vpack.c.b16 %v1368, %v1364
  %v1481 = vpack.c.b16 %v1369, %v1365
  %v1482 = vpack.c.b16 %v1370, %v1366
  %v1483 = vpack.c.b16 %v1375, %v1371
  %v1484 = vpack.c.b16 %v1376, %v1372
  %v1485 = vpack.c.b16 %v1377, %v1373
  %v1486 = vpack.c.b16 %v1378, %v1374
  %v1487 = vpack.c.b16 %v1383, %v1379
  %v1488 = vpack.c.b16 %v1384, %v1380
  %v1489 = vpack.c.b16 %v1385, %v1381
  %v1490 = vpack.c.b16 %v1386, %v1382
  %v1491 = vpack.c.b16 %v1391, %v1387
  %v1492 = vpack.c.b16 %v1392, %v1388
  %v1493 = vpack.c.b16 %v1393, %v1389
  %v1494 = vpack.c.b16 %v1394, %v1390
  %v1495 = vpack.c.b16 %v1399, %v1395
  %v1496 = vpack.c.b16 %v1400, %v1396
  %v1497 = vpack.c.b16 %v1401, %v1397
  %v1498 = vpack.c.b16 %v1402, %v1398
  %v1499 = vpack.c.b16 %v1407, %v1403
  %v1500 = vpack.c.b16 %v1408, %v1404
  %v1501 = vpack.c.b16 %v1409, %v1405
  %v1502 = vpack.c.b16 %v1410, %v1406
  %v1503 = vpack.c.b16 %v1415, %v1411
  %v1504 = vpack.c.b16 %v1416, %v1412
  %v1505 = vpack.c.b16 %v1417, %v1413
  %v1506 = vpack.c.b16 %v1418, %v1414
  %v1507 = vpack.c.b16 %v1423, %v1419
  %v1508 = vpack.c.b16 %v1424, %v1420
  %v1509 = vpack.c.b16 %v1425, %v1421
  %v1510 = vpack.c.b16 %v1426, %v1422
  %v1511 = vpack.c.b16 %v1431, %v1427
  %v1512 = vpack.c.b16 %v1432, %v1428
  %v1513 = vpack.c.b16 %v1433, %v1429
  %v1514 = vpack.c.b16 %v1434, %v1430
  %v1515 = vpack.c.b16 %v1439, %v1435
  %v1516 = vpack.c.b16 %v1440, %v1436
  %v1517 = vpack.c.b16 %v1441, %v1437
  %v1518 = vpack.c.b16 %v1442, %v1438
  %v1519 = vpack.c.b16 %v1447, %v1443
  %v1520 = vpack.c.b16 %v1448, %v1444
  %v1521 = vpack.c.b16 %v1449, %v1445
  %v1522 = vpack.c.b16 %v1450, %v1446
  %v1523 = vpack.c.b16 %v1455, %v1451
  %v1524 = vpack.c.b16 %v1456, %v1452
  %v1525 = vpack.c.b16 %v1457, %v1453
  %v1526 = vpack.c.b16 %v1458, %v1454
  %v1527 = vpack.c.b16 %v1463, %v1459
  %v1528 = vpack.c.b16 %v1464, %v1460
  %v1529 = vpack.c.b16 %v1465, %v1461
  %v1530 = vpack.c.b16 %v1466, %v1462
  %1595 = vmatprep.subr.bf16.mxu0 %v1468
  %1596 = vmatpush1.bf16.msra.mxu0 %v1467
  %1597 = vmatprep.subr.bf16.mxu0 %v1472
  %1598 = vmatpush1.bf16.msra.mxu0 %v1471
  %1599 = vmatprep.subr.bf16.mxu0 %v1476
  %1600 = vmatpush1.bf16.msra.mxu0 %v1475
  %1601 = vmatprep.subr.bf16.mxu0 %v1480
  %1602 = vmatpush1.bf16.msra.mxu0 %v1479
  %1603 = vmatprep.subr.bf16.mxu0 %v1484
  %1604 = vmatpush1.bf16.msra.mxu0 %v1483
  %1605 = vmatprep.subr.bf16.mxu0 %v1488
  %1606 = vmatpush1.bf16.msra.mxu0 %v1487
  %1607 = vmatprep.subr.bf16.mxu0 %v1492
  %1608 = vmatpush1.bf16.msra.mxu0 %v1491
  %1609 = vmatprep.subr.bf16.mxu0 %v1496
  %1610 = vmatpush1.bf16.msra.mxu0 %v1495
  %1611 = vmatprep.subr.bf16.mxu0 %v1500
  %1612 = vmatpush1.bf16.msra.mxu0 %v1499
  %1613 = vmatprep.subr.bf16.mxu0 %v1504
  %1614 = vmatpush1.bf16.msra.mxu0 %v1503
  %1615 = vmatprep.subr.bf16.mxu0 %v1508
  %1616 = vmatpush1.bf16.msra.mxu0 %v1507
  %1617 = vmatprep.subr.bf16.mxu0 %v1512
  %1618 = vmatpush1.bf16.msra.mxu0 %v1511
  %1619 = vmatprep.subr.bf16.mxu0 %v1516
  %1620 = vmatpush1.bf16.msra.mxu0 %v1515
  %1621 = vmatprep.subr.bf16.mxu0 %v1520
  %1622 = vmatpush1.bf16.msra.mxu0 %v1519
  %1623 = vmatprep.subr.bf16.mxu0 %v1524
  %1624 = vmatpush1.bf16.msra.mxu0 %v1523
  %1625 = vmatprep.subr.bf16.mxu0 %v1528
  %1626 = vmatpush1.bf16.msra.mxu0 %v1527
  %1627 = vmatprep.mubr.bf16.mxu0 %v1188
  %1628 = vmatmul.mubr.bf16.gmra.mrb[0].mxu0 %v1187
  %v1629 = vpop.f32.mrb[0].mxu0
  %v1630 = vadd.f32 %v1258, %v1629
  %v1631 = vpop.f32.mrb[0].mxu0
  %v1632 = vadd.f32 %v1262, %v1631
  %v1633 = vpop.f32.mrb[0].mxu0
  %v1634 = vpop.f32.mrb[0].mxu0
  %1635 = vdwg.mxu0
  %1636 = vmatprep.subr.bf16.mxu0 %v1470
  %1637 = vmatpush1.bf16.msra.mxu0 %v1469
  %1638 = vmatprep.subr.bf16.mxu0 %v1474
  %1639 = vmatpush1.bf16.msra.mxu0 %v1473
  %1640 = vmatprep.subr.bf16.mxu0 %v1478
  %1641 = vmatpush1.bf16.msra.mxu0 %v1477
  %1642 = vmatprep.subr.bf16.mxu0 %v1482
  %1643 = vmatpush1.bf16.msra.mxu0 %v1481
  %1644 = vmatprep.subr.bf16.mxu0 %v1486
  %1645 = vmatpush1.bf16.msra.mxu0 %v1485
  %1646 = vmatprep.subr.bf16.mxu0 %v1490
  %1647 = vmatpush1.bf16.msra.mxu0 %v1489
  %1648 = vmatprep.subr.bf16.mxu0 %v1494
  %1649 = vmatpush1.bf16.msra.mxu0 %v1493
  %1650 = vmatprep.subr.bf16.mxu0 %v1498
  %1651 = vmatpush1.bf16.msra.mxu0 %v1497
  %1652 = vmatprep.subr.bf16.mxu0 %v1502
  %1653 = vmatpush1.bf16.msra.mxu0 %v1501
  %1654 = vmatprep.subr.bf16.mxu0 %v1506
  %1655 = vmatpush1.bf16.msra.mxu0 %v1505
  %1656 = vmatprep.subr.bf16.mxu0 %v1510
  %1657 = vmatpush1.bf16.msra.mxu0 %v1509
  %1658 = vmatprep.subr.bf16.mxu0 %v1514
  %1659 = vmatpush1.bf16.msra.mxu0 %v1513
  %1660 = vmatprep.subr.bf16.mxu0 %v1518
  %1661 = vmatpush1.bf16.msra.mxu0 %v1517
  %1662 = vmatprep.subr.bf16.mxu0 %v1522
  %1663 = vmatpush1.bf16.msra.mxu0 %v1521
  %1664 = vmatprep.subr.bf16.mxu0 %v1526
  %1665 = vmatpush1.bf16.msra.mxu0 %v1525
  %1666 = vmatprep.subr.bf16.mxu0 %v1530
  %1667 = vmatpush1.bf16.msra.mxu0 %v1529
  %1668 = vmatprep.mubr.bf16.mxu0 %v1188
  %1669 = vmatmul.mubr.bf16.gmra.mrb[0].mxu0 %v1187
  %v1670 = vpop.f32.mrb[0].mxu0
  %v1671 = vadd.f32 %v1266, %v1670
  %v1672 = vpop.f32.mrb[0].mxu0
  %v1673 = vadd.f32 %v1270, %v1672
  %v1674 = vpop.f32.mrb[0].mxu0
  %v1675 = vpop.f32.mrb[0].mxu0
  %1676 = vdwg.mxu0
  %v1677 = vmax.f32 %v1630, 0.0
  %v1678 = vmax.f32 %v1632, 0.0
  %v1679 = vmax.f32 %v1671, 0.0
  %v1680 = vmax.f32 %v1673, 0.0
  %v1681 = vpack.c.bf16 %v1677, %v1677
  %v1682 = vpack.c.bf16 %v1678, %v1678
  %v1683 = vpack.c.bf16 %v1679, %v1679
  %v1684 = vpack.c.bf16 %v1680, %v1680
  %v1685 = vld [vmem:[%s16] sm:$0xf]
  %v1686 = vld [vmem:[%s16 + $0x4] sm:$0xf]
  %v1687 = vld [vmem:[%s16 + $0x8] sm:$0xf]
  %v1688 = vld [vmem:[%s16 + $0xc] sm:$0xf]
  %v1689 = vld [vmem:[%s16 + $0x10] sm:$0xf]
  %v1690 = vld [vmem:[%s16 + $0x14] sm:$0xf]
  %v1691 = vld [vmem:[%s16 + $0x18] sm:$0xf]
  %v1692 = vld [vmem:[%s16 + $0x1c] sm:$0xf]
  %v1693 = vld [vmem:[%s16 + $0x20] sm:$0xf]
  %v1694 = vld [vmem:[%s16 + $0x24] sm:$0xf]
  %v1695 = vld [vmem:[%s16 + $0x28] sm:$0xf]
  %v1696 = vld [vmem:[%s16 + $0x2c] sm:$0xf]
  %v1697 = vld [vmem:[%s16 + $0x30] sm:$0xf]
  %v1698 = vld [vmem:[%s16 + $0x34] sm:$0xf]
  %v1699 = vld [vmem:[%s16 + $0x38] sm:$0xf]
  %v1700 = vld [vmem:[%s16 + $0x3c] sm:$0xf]
  %v1701 = vld [vmem:[%s16 + $0x40] sm:$0xf]
  %v1702 = vld [vmem:[%s16 + $0x44] sm:$0xf]
  %v1703 = vld [vmem:[%s16 + $0x48] sm:$0xf]
  %v1704 = vld [vmem:[%s16 + $0x4c] sm:$0xf]
  %v1705 = vld [vmem:[%s16 + $0x50] sm:$0xf]
  %v1706 = vld [vmem:[%s16 + $0x54] sm:$0xf]
  %v1707 = vld [vmem:[%s16 + $0x58] sm:$0xf]
  %v1708 = vld [vmem:[%s16 + $0x5c] sm:$0xf]
  %v1709 = vld [vmem:[%s16 + $0x60] sm:$0xf]
  %v1710 = vld [vmem:[%s16 + $0x64] sm:$0xf]
  %v1711 = vld [vmem:[%s16 + $0x68] sm:$0xf]
  %v1712 = vld [vmem:[%s16 + $0x6c] sm:$0xf]
  %v1713 = vld [vmem:[%s16 + $0x70] sm:$0xf]
  %v1714 = vld [vmem:[%s16 + $0x74] sm:$0xf]
  %v1715 = vld [vmem:[%s16 + $0x78] sm:$0xf]
  %v1716 = vld [vmem:[%s16 + $0x7c] sm:$0xf]
  %v1717 = vld [vmem:[%s16 + $0x80] sm:$0xf]
  %v1718 = vld [vmem:[%s16 + $0x84] sm:$0xf]
  %v1719 = vld [vmem:[%s16 + $0x88] sm:$0xf]
  %v1720 = vld [vmem:[%s16 + $0x8c] sm:$0xf]
  %v1721 = vld [vmem:[%s16 + $0x90] sm:$0xf]
  %v1722 = vld [vmem:[%s16 + $0x94] sm:$0xf]
  %v1723 = vld [vmem:[%s16 + $0x98] sm:$0xf]
  %v1724 = vld [vmem:[%s16 + $0x9c] sm:$0xf]
  %v1725 = vld [vmem:[%s16 + $0xa0] sm:$0xf]
  %v1726 = vld [vmem:[%s16 + $0xa4] sm:$0xf]
  %v1727 = vld [vmem:[%s16 + $0xa8] sm:$0xf]
  %v1728 = vld [vmem:[%s16 + $0xac] sm:$0xf]
  %v1729 = vld [vmem:[%s16 + $0xb0] sm:$0xf]
  %v1730 = vld [vmem:[%s16 + $0xb4] sm:$0xf]
  %v1731 = vld [vmem:[%s16 + $0xb8] sm:$0xf]
  %v1732 = vld [vmem:[%s16 + $0xbc] sm:$0xf]
  %v1733 = vld [vmem:[%s16 + $0xc0] sm:$0xf]
  %v1734 = vld [vmem:[%s16 + $0xc4] sm:$0xf]
  %v1735 = vld [vmem:[%s16 + $0xc8] sm:$0xf]
  %v1736 = vld [vmem:[%s16 + $0xcc] sm:$0xf]
  %v1737 = vld [vmem:[%s16 + $0xd0] sm:$0xf]
  %v1738 = vld [vmem:[%s16 + $0xd4] sm:$0xf]
  %v1739 = vld [vmem:[%s16 + $0xd8] sm:$0xf]
  %v1740 = vld [vmem:[%s16 + $0xdc] sm:$0xf]
  %v1741 = vld [vmem:[%s16 + $0xe0] sm:$0xf]
  %v1742 = vld [vmem:[%s16 + $0xe4] sm:$0xf]
  %v1743 = vld [vmem:[%s16 + $0xe8] sm:$0xf]
  %v1744 = vld [vmem:[%s16 + $0xec] sm:$0xf]
  %v1745 = vld [vmem:[%s16 + $0xf0] sm:$0xf]
  %v1746 = vld [vmem:[%s16 + $0xf4] sm:$0xf]
  %v1747 = vld [vmem:[%s16 + $0xf8] sm:$0xf]
  %v1748 = vld [vmem:[%s16 + $0xfc] sm:$0xf]
  %v1749 = vld [vmem:[%s17] sm:$0x1]
  %v1751 = vlaneseq
  %v1752 = vshrl.u32 %v1751, 7
  %v1753 = vsub.s32 0, %v1752
  %v1754 = vrot.slane %v1749, %v1753
  %v1820 = vunpack.c.l.b16 %v1685
  %v1821 = vunpack.c.l.b16 %v1686
  %v1822 = vunpack.c.l.b16 %v1687
  %v1823 = vunpack.c.l.b16 %v1688
  %v1824 = vunpack.c.l.b16 %v1689
  %v1825 = vunpack.c.l.b16 %v1690
  %v1826 = vunpack.c.l.b16 %v1691
  %v1827 = vunpack.c.l.b16 %v1692
  %v1828 = vunpack.c.l.b16 %v1693
  %v1829 = vunpack.c.l.b16 %v1694
  %v1830 = vunpack.c.l.b16 %v1695
  %v1831 = vunpack.c.l.b16 %v1696
  %v1832 = vunpack.c.l.b16 %v1697
  %v1833 = vunpack.c.l.b16 %v1698
  %v1834 = vunpack.c.l.b16 %v1699
  %v1835 = vunpack.c.l.b16 %v1700
  %v1836 = vunpack.c.l.b16 %v1701
  %v1837 = vunpack.c.l.b16 %v1702
  %v1838 = vunpack.c.l.b16 %v1703
  %v1839 = vunpack.c.l.b16 %v1704
  %v1840 = vunpack.c.l.b16 %v1705
  %v1841 = vunpack.c.l.b16 %v1706
  %v1842 = vunpack.c.l.b16 %v1707
  %v1843 = vunpack.c.l.b16 %v1708
  %v1844 = vunpack.c.l.b16 %v1709
  %v1845 = vunpack.c.l.b16 %v1710
  %v1846 = vunpack.c.l.b16 %v1711
  %v1847 = vunpack.c.l.b16 %v1712
  %v1848 = vunpack.c.l.b16 %v1713
  %v1849 = vunpack.c.l.b16 %v1714
  %v1850 = vunpack.c.l.b16 %v1715
  %v1851 = vunpack.c.l.b16 %v1716
  %v1852 = vunpack.c.l.b16 %v1717
  %v1853 = vunpack.c.l.b16 %v1718
  %v1854 = vunpack.c.l.b16 %v1719
  %v1855 = vunpack.c.l.b16 %v1720
  %v1856 = vunpack.c.l.b16 %v1721
  %v1857 = vunpack.c.l.b16 %v1722
  %v1858 = vunpack.c.l.b16 %v1723
  %v1859 = vunpack.c.l.b16 %v1724
  %v1860 = vunpack.c.l.b16 %v1725
  %v1861 = vunpack.c.l.b16 %v1726
  %v1862 = vunpack.c.l.b16 %v1727
  %v1863 = vunpack.c.l.b16 %v1728
  %v1864 = vunpack.c.l.b16 %v1729
  %v1865 = vunpack.c.l.b16 %v1730
  %v1866 = vunpack.c.l.b16 %v1731
  %v1867 = vunpack.c.l.b16 %v1732
  %v1868 = vunpack.c.l.b16 %v1733
  %v1869 = vunpack.c.l.b16 %v1734
  %v1870 = vunpack.c.l.b16 %v1735
  %v1871 = vunpack.c.l.b16 %v1736
  %v1872 = vunpack.c.l.b16 %v1737
  %v1873 = vunpack.c.l.b16 %v1738
  %v1874 = vunpack.c.l.b16 %v1739
  %v1875 = vunpack.c.l.b16 %v1740
  %v1876 = vunpack.c.l.b16 %v1741
  %v1877 = vunpack.c.l.b16 %v1742
  %v1878 = vunpack.c.l.b16 %v1743
  %v1879 = vunpack.c.l.b16 %v1744
  %v1880 = vunpack.c.l.b16 %v1745
  %v1881 = vunpack.c.l.b16 %v1746
  %v1882 = vunpack.c.l.b16 %v1747
  %v1883 = vunpack.c.l.b16 %v1748
  %v1884 = vpack.c.b16 %v1821, %v1820
  %v1885 = vpack.c.b16 %v1823, %v1822
  %v1886 = vpack.c.b16 %v1825, %v1824
  %v1887 = vpack.c.b16 %v1827, %v1826
  %v1888 = vpack.c.b16 %v1829, %v1828
  %v1889 = vpack.c.b16 %v1831, %v1830
  %v1890 = vpack.c.b16 %v1833, %v1832
  %v1891 = vpack.c.b16 %v1835, %v1834
  %v1892 = vpack.c.b16 %v1837, %v1836
  %v1893 = vpack.c.b16 %v1839, %v1838
  %v1894 = vpack.c.b16 %v1841, %v1840
  %v1895 = vpack.c.b16 %v1843, %v1842
  %v1896 = vpack.c.b16 %v1845, %v1844
  %v1897 = vpack.c.b16 %v1847, %v1846
  %v1898 = vpack.c.b16 %v1849, %v1848
  %v1899 = vpack.c.b16 %v1851, %v1850
  %v1900 = vpack.c.b16 %v1853, %v1852
  %v1901 = vpack.c.b16 %v1855, %v1854
  %v1902 = vpack.c.b16 %v1857, %v1856
  %v1903 = vpack.c.b16 %v1859, %v1858
  %v1904 = vpack.c.b16 %v1861, %v1860
  %v1905 = vpack.c.b16 %v1863, %v1862
  %v1906 = vpack.c.b16 %v1865, %v1864
  %v1907 = vpack.c.b16 %v1867, %v1866
  %v1908 = vpack.c.b16 %v1869, %v1868
  %v1909 = vpack.c.b16 %v1871, %v1870
  %v1910 = vpack.c.b16 %v1873, %v1872
  %v1911 = vpack.c.b16 %v1875, %v1874
  %v1912 = vpack.c.b16 %v1877, %v1876
  %v1913 = vpack.c.b16 %v1879, %v1878
  %v1914 = vpack.c.b16 %v1881, %v1880
  %v1915 = vpack.c.b16 %v1883, %v1882
  %1948 = vmatprep.subr.bf16.mxu0 0
  %1949 = vmatpush1.bf16.msra.mxu0 %v1884
  %1950 = vmatprep.subr.bf16.mxu0 0
  %1951 = vmatpush1.bf16.msra.mxu0 %v1885
  %1952 = vmatprep.subr.bf16.mxu0 0
  %1953 = vmatpush1.bf16.msra.mxu0 %v1886
  %1954 = vmatprep.subr.bf16.mxu0 0
  %1955 = vmatpush1.bf16.msra.mxu0 %v1887
  %1956 = vmatprep.subr.bf16.mxu0 0
  %1957 = vmatpush1.bf16.msra.mxu0 %v1888
  %1958 = vmatprep.subr.bf16.mxu0 0
  %1959 = vmatpush1.bf16.msra.mxu0 %v1889
  %1960 = vmatprep.subr.bf16.mxu0 0
  %1961 = vmatpush1.bf16.msra.mxu0 %v1890
  %1962 = vmatprep.subr.bf16.mxu0 0
  %1963 = vmatpush1.bf16.msra.mxu0 %v1891
  %1964 = vmatprep.subr.bf16.mxu0 0
  %1965 = vmatpush1.bf16.msra.mxu0 %v1892
  %1966 = vmatprep.subr.bf16.mxu0 0
  %1967 = vmatpush1.bf16.msra.mxu0 %v1893
  %1968 = vmatprep.subr.bf16.mxu0 0
  %1969 = vmatpush1.bf16.msra.mxu0 %v1894
  %1970 = vmatprep.subr.bf16.mxu0 0
  %1971 = vmatpush1.bf16.msra.mxu0 %v1895
  %1972 = vmatprep.subr.bf16.mxu0 0
  %1973 = vmatpush1.bf16.msra.mxu0 %v1896
  %1974 = vmatprep.subr.bf16.mxu0 0
  %1975 = vmatpush1.bf16.msra.mxu0 %v1897
  %1976 = vmatprep.subr.bf16.mxu0 0
  %1977 = vmatpush1.bf16.msra.mxu0 %v1898
  %1978 = vmatprep.subr.bf16.mxu0 0
  %1979 = vmatpush1.bf16.msra.mxu0 %v1899
  %1980 = vmatprep.mubr.bf16.mxu0 %v1682
  %1981 = vmatmul.mubr.bf16.gmra.mrb[0].mxu0 %v1681
  %v1982 = vpop.f32.mrb[0].mxu0
  %v1983 = vadd.f32 %v1754, %v1982
  %v1984 = vpop.f32.mrb[0].mxu0
  %v1985 = vpop.f32.mrb[0].mxu0
  %v1986 = vpop.f32.mrb[0].mxu0
  %1987 = vdwg.mxu0
  %1988 = vmatprep.subr.bf16.mxu0 0
  %1989 = vmatpush1.bf16.msra.mxu0 %v1900
  %1990 = vmatprep.subr.bf16.mxu0 0
  %1991 = vmatpush1.bf16.msra.mxu0 %v1901
  %1992 = vmatprep.subr.bf16.mxu0 0
  %1993 = vmatpush1.bf16.msra.mxu0 %v1902
  %1994 = vmatprep.subr.bf16.mxu0 0
  %1995 = vmatpush1.bf16.msra.mxu0 %v1903
  %1996 = vmatprep.subr.bf16.mxu0 0
  %1997 = vmatpush1.bf16.msra.mxu0 %v1904
  %1998 = vmatprep.subr.bf16.mxu0 0
  %1999 = vmatpush1.bf16.msra.mxu0 %v1905
  %2000 = vmatprep.subr.bf16.mxu0 0
  %2001 = vmatpush1.bf16.msra.mxu0 %v1906
  %2002 = vmatprep.subr.bf16.mxu0 0
  %2003 = vmatpush1.bf16.msra.mxu0 %v1907
  %2004 = vmatprep.subr.bf16.mxu0 0
  %2005 = vmatpush1.bf16.msra.mxu0 %v1908
  %2006 = vmatprep.subr.bf16.mxu0 0
  %2007 = vmatpush1.bf16.msra.mxu0 %v1909
  %2008 = vmatprep.subr.bf16.mxu0 0
  %2009 = vmatpush1.bf16.msra.mxu0 %v1910
  %2010 = vmatprep.subr.bf16.mxu0 0
  %2011 = vmatpush1.bf16.msra.mxu0 %v1911
  %2012 = vmatprep.subr.bf16.mxu0 0
  %2013 = vmatpush1.bf16.msra.mxu0 %v1912
  %2014 = vmatprep.subr.bf16.mxu0 0
  %2015 = vmatpush1.bf16.msra.mxu0 %v1913
  %2016 = vmatprep.subr.bf16.mxu0 0
  %2017 = vmatpush1.bf16.msra.mxu0 %v1914
  %2018 = vmatprep.subr.bf16.mxu0 0
  %2019 = vmatpush1.bf16.msra.mxu0 %v1915
  %2020 = vmatprep.mubr.bf16.mxu0 %v1684
  %2021 = vmatmul.mubr.bf16.gmra.mrb[0].mxu0 %v1683
  %v2022 = vpop.f32.mrb[0].mxu0
  %v2023 = vadd.f32 %v1983, %v2022
  %v2024 = vpop.f32.mrb[0].mxu0
  %v2025 = vpop.f32.mrb[0].mxu0
  %v2026 = vpop.f32.mrb[0].mxu0
  %2027 = vdwg.mxu0
  %v2028 = vadd.f32 %v958, %v2023
  %2029 = vst [vmem:[%s18] sm:$0xff] %v2028
  // Predicated region
  $region74: #{vae_forward.1} parent=0 // pred_check
    _
  $region75: #{vae_forward.1} parent=0 // pred_check_branch
    %2031 = sbr.rel (0) target = $region77
  $region76: #{vae_forward.1} parent=0 // pred_region
    _
  $region77: #{vae_forward.1} parent=0 // pred_fallthru
    _
  // Predicated region
  $region78: #{vae_forward.1} parent=0 // pred_check
    _
  $region79: #{vae_forward.1} parent=0 // pred_check_branch
    %2033 = sbr.rel (0) target = $region81
  $region80: #{vae_forward.1} parent=0 // pred_region
    _
  $region81: #{vae_forward.1} parent=0 // pred_fallthru
    _

</llo_original>
